<compile_context>
chip_gen: v7x
topology: tpu7x:2x2x1
jax: 0.10.0
libtpu: 0.0.40
codegen_flags: <defaults>
</compile_context>

<pallas_src>
import functools

import jax
import jax.numpy as jnp
from jax.experimental import pallas as pl
from jax.experimental.pallas import tpu as pltpu

LRELU_SLOPE = 1e-2
IN_EPS = 1e-5


def _fused_stacked_conv_kernel(x_ref, w1_ref, g1_ref, b1_ref,
                               w2_ref, g2_ref, b2_ref,
                               o_ref, pad1_ref, pad2_ref, *, cin, cout):
    """One batch element: 2 x (3x3 conv(pad=1, stride=1) + InstanceNorm + LeakyReLU), fused.

    Lane-dense layout: activations are (H, W*C) slabs, channel fastest on the lane axis.
      x_ref:    (1, H, W*Cin)             input slab
      w1_ref:   (3, (W+2)*Cin,  W*Cout)   banded conv1 weights, one matrix per kh tap
      g1_ref:   (1, W*Cout)               conv1 IN gamma, pre-tiled to lanes
      b1_ref:   (1, W*Cout)               conv1 IN beta,  pre-tiled to lanes
      w2_ref:   (3, (W+2)*Cout, W*Cout)   banded conv2 weights
      g2_ref, b2_ref: (1, W*Cout)
      o_ref:    (1, H, W*Cout)            output slab (lane-dense store)
      pad1_ref: VMEM (H+2, (W+2)*Cin) f32 zero-padded input scratch
      pad2_ref: VMEM (H+2, (W+2)*Cout) f32 zero-padded intermediate scratch
    NOTE: the conv bias is intentionally not an input — InstanceNorm cancels it exactly.
    """
    f32 = jnp.float32
    H = o_ref.shape[1]
    WCout = o_ref.shape[2]
    WCin = x_ref.shape[2]
    W = WCout // cout
    inv_n = 1.0 / float(H * W)

    # chan_match[l, l2] = 1.0 iff lanes l and l2 carry the same channel (lane = w*Cout + c).
    # Turns per-lane column sums into per-lane *channel* sums with one (H,128)x(128,128)
    # MXU matmul — no reshapes, transposes or tiny M=1 ops.
    row = jax.lax.broadcasted_iota(jnp.int32, (WCout, WCout), 0)
    col = jax.lax.broadcasted_iota(jnp.int32, (WCout, WCout), 1)
    chan_match = (row % cout == col % cout).astype(f32)

    def conv_in_lrelu(padbuf_ref, w_ref, gamma_l, beta_l):
        # 3x3 conv as 3 banded matmuls (one per kh tap); kw + Cin folded into K.
        buf = padbuf_ref[...]                                        # (H+2, (W+2)*C)
        acc = jnp.zeros((H, WCout), dtype=f32)
        for kh in range(3):
            acc = acc + jnp.dot(buf[kh:kh + H, :], w_ref[kh],
                                preferred_element_type=f32)          # (H, W*Cout)

        # InstanceNorm stats in one pass (sum + sum of squares), replicated per lane.
        s = jnp.sum(jnp.dot(acc, chan_match, preferred_element_type=f32),
                    axis=0, keepdims=True)                           # (1, W*Cout)
        ss = jnp.sum(jnp.dot(acc * acc, chan_match, preferred_element_type=f32),
                     axis=0, keepdims=True)                          # (1, W*Cout)
        mean = s * inv_n
        var = ss * inv_n - mean * mean                               # biased variance
        scale = gamma_l * jax.lax.rsqrt(var + IN_EPS)                # (1, W*Cout)
        shift = beta_l - mean * scale
        y = acc * scale + shift                                      # fused affine
        return jnp.where(y >= 0, y, LRELU_SLOPE * y)                 # LeakyReLU

    # ---- block 1: pad input into VMEM (no separate HBM pad pass) ----
    pad1_ref[...] = jnp.zeros_like(pad1_ref)
    pad1_ref[1:H + 1, cin:cin + WCin] = x_ref[0].astype(f32)
    y1 = conv_in_lrelu(pad1_ref, w1_ref,
                       g1_ref[...].astype(f32), b1_ref[...].astype(f32))

    # ---- block 2: intermediate activation stays in VMEM (never round-trips HBM) ----
    pad2_ref[...] = jnp.zeros_like(pad2_ref)
    pad2_ref[1:H + 1, cout:cout + WCout] = y1
    y2 = conv_in_lrelu(pad2_ref, w2_ref,
                       g2_ref[...].astype(f32), b2_ref[...].astype(f32))

    o_ref[0] = y2.astype(o_ref.dtype)


def _banded_conv_weights(w_hwio, W):
    """(3, 3, Cin, Cout) -> (3, (W+2)*Cin, W*Cout).

    band[kh][v*Cin+ci, u*Cout+co] = w[kh, v-u, ci, co] if 0 <= v-u < 3 else 0, so that
    `padded_row_slab @ band[kh]` performs the kw and Cin contractions of the conv in one
    MXU matmul (v = padded input column, u = output column).  One-time parameter prep.
    """
    KH, KW, Cin, Cout = w_hwio.shape
    v = jnp.arange(W + 2)[None, :, None]
    u = jnp.arange(W)[None, None, :]
    k = jnp.arange(KW)[:, None, None]
    sel = (v == u + k).astype(w_hwio.dtype)                    # (KW, W+2, W)
    band = jnp.einsum('kvu,hkio->hviuo', sel, w_hwio)          # (KH, W+2, Cin, W, Cout)
    return band.reshape(KH, (W + 2) * Cin, W * Cout)


def stacked_conv_layers_pallas(x_nchw, params):
    """StackedConvLayers forward (num_convs=2). Input/output in PyTorch NCHW convention.

    params: [(w1, b1, gamma1, beta1), (w2, b2, gamma2, beta2)], weights in HWIO layout.
    The conv biases are mathematically cancelled by the InstanceNorm mean subtraction and
    are therefore not consumed by the kernel.
    """
    assert len(params) == 2, "fused kernel implements the nnU-Net default num_convs=2"
    (w1, _b1, g1, be1), (w2, _b2, g2, be2) = params

    N, Cin, H, W = x_nchw.shape
    Cout = w1.shape[-1]
    WCin, WCout = W * Cin, W * Cout

    # NCHW -> lane-dense (N, H, W*Cin) slab (W*Cout = 128 lanes for the demo sizes).
    x_slab = jnp.transpose(x_nchw, (0, 2, 3, 1)).reshape(N, H, WCin)

    w1b = _banded_conv_weights(w1.astype(jnp.float32), W)      # (3, (W+2)*Cin,  W*Cout)
    w2b = _banded_conv_weights(w2.astype(jnp.float32), W)      # (3, (W+2)*Cout, W*Cout)
    g1l = jnp.tile(g1.reshape(1, Cout), (1, W)).astype(jnp.float32)    # (1, W*Cout)
    b1l = jnp.tile(be1.reshape(1, Cout), (1, W)).astype(jnp.float32)
    g2l = jnp.tile(g2.reshape(1, Cout), (1, W)).astype(jnp.float32)
    b2l = jnp.tile(be2.reshape(1, Cout), (1, W)).astype(jnp.float32)

    kernel = functools.partial(_fused_stacked_conv_kernel, cin=Cin, cout=Cout)

    out_slab = pl.pallas_call(
        kernel,
        out_shape=jax.ShapeDtypeStruct((N, H, WCout), x_nchw.dtype),
        grid_spec=pltpu.PrefetchScalarGridSpec(
            num_scalar_prefetch=0,
            grid=(N,),
            in_specs=[
                pl.BlockSpec((1, H, WCin), lambda n: (n, 0, 0)),
                pl.BlockSpec((3, (W + 2) * Cin, WCout), lambda n: (0, 0, 0)),
                pl.BlockSpec((1, WCout), lambda n: (0, 0)),
                pl.BlockSpec((1, WCout), lambda n: (0, 0)),
                pl.BlockSpec((3, (W + 2) * Cout, WCout), lambda n: (0, 0, 0)),
                pl.BlockSpec((1, WCout), lambda n: (0, 0)),
                pl.BlockSpec((1, WCout), lambda n: (0, 0)),
            ],
            out_specs=pl.BlockSpec((1, H, WCout), lambda n: (n, 0, 0)),
            scratch_shapes=[
                pltpu.VMEM((H + 2, (W + 2) * Cin), jnp.float32),
                pltpu.VMEM((H + 2, (W + 2) * Cout), jnp.float32),
            ],
        ),
        compiler_params=pltpu.CompilerParams(
            dimension_semantics=("parallel",)),
    )(x_slab, w1b, g1l, b1l, w2b, g2l, b2l)

    # (N, H, W*Cout) -> NCHW
    return jnp.transpose(out_slab.reshape(N, H, W, Cout), (0, 3, 1, 2))


# ----------------------------- pure-JAX reference -----------------------------
def _conv_block_ref(x_nhwc, w_hwio, bias, gamma, beta):
    y = jax.lax.conv_general_dilated(
        x_nhwc.astype(jnp.float32), w_hwio.astype(jnp.float32),
        window_strides=(1, 1), padding=((1, 1), (1, 1)),
        dimension_numbers=("NHWC", "HWIO", "NHWC"))
    y = y + bias.reshape(1, 1, 1, -1)   # bias kept here; InstanceNorm cancels it
    mean = jnp.mean(y, axis=(1, 2), keepdims=True)
    var = jnp.mean(jnp.square(y - mean), axis=(1, 2), keepdims=True)
    y = (y - mean) * jax.lax.rsqrt(var + IN_EPS)
    y = y * gamma.reshape(1, 1, 1, -1) + beta.reshape(1, 1, 1, -1)
    return jnp.where(y >= 0, y, LRELU_SLOPE * y)


def stacked_conv_layers_ref(x_nchw, params):
    x = jnp.transpose(x_nchw, (0, 2, 3, 1))
    for (w, b, g, be) in params:
        x = _conv_block_ref(x, w, b, g, be)
    return jnp.transpose(x, (0, 3, 1, 2))


# ------------------------------------ main ------------------------------------
if __name__ == "__main__":
    key = jax.random.PRNGKey(0)

    N, Cin, H, W = 2, 4, 16, 16
    Cout = 8
    num_convs = 2

    # Deterministic parameter init (synthetic, not a checkpoint).
    params = []
    in_ch = Cin
    for i in range(num_convs):
        key, kw_, kb_, kg_, kbe_ = jax.random.split(key, 5)
        w = 0.1 * jax.random.normal(kw_, (3, 3, in_ch, Cout), dtype=jnp.float32)
        b = 0.05 * jax.random.normal(kb_, (Cout,), dtype=jnp.float32)
        g = 1.0 + 0.1 * jax.random.normal(kg_, (Cout,), dtype=jnp.float32)
        be = 0.05 * jax.random.normal(kbe_, (Cout,), dtype=jnp.float32)
        params.append((w, b, g, be))
        in_ch = Cout

    key, kx = jax.random.split(key)
    x = jax.random.normal(kx, (N, Cin, H, W), dtype=jnp.float32)  # NCHW input

    out = jax.jit(functools.partial(stacked_conv_layers_pallas, params=params))(x)
    out = jax.block_until_ready(out)

    ref = stacked_conv_layers_ref(x, params)
    assert out.shape == (N, Cout, H, W), out.shape
    assert jnp.allclose(out, ref, atol=2e-3, rtol=2e-3), \
        float(jnp.max(jnp.abs(out - ref)))

    print("KERNEL_OK")
</pallas_src>

<mosaic_0001>
module attributes {stable_mosaic.version = 11 : i64} {
  func.func @_fused_stacked_conv_kernel(%arg0: i32, %arg1: memref<1x16x64xf32, #tpu.memory_space<vmem>>, %arg2: memref<3x72x128xf32, #tpu.memory_space<vmem>>, %arg3: memref<1x128xf32, #tpu.memory_space<vmem>>, %arg4: memref<1x128xf32, #tpu.memory_space<vmem>>, %arg5: memref<3x144x128xf32, #tpu.memory_space<vmem>>, %arg6: memref<1x128xf32, #tpu.memory_space<vmem>>, %arg7: memref<1x128xf32, #tpu.memory_space<vmem>>, %arg8: memref<1x16x128xf32, #tpu.memory_space<vmem>>, %arg9: memref<18x72xf32, #tpu.memory_space<vmem>>, %arg10: memref<18x144xf32, #tpu.memory_space<vmem>>) attributes {dimension_semantics = [#tpu.dimension_semantics<parallel>], iteration_bounds = array<i64: 2>, scalar_prefetch = 0 : i64, scratch_operands = 2 : i64, tpu.core_type = #tpu.core_type<tc>, window_params = [{transform_indices = @transform_0, window_bounds = array<i64: 1, 16, 64>}, {pipeline_mode = #tpu.pipeline_mode<synchronous>, transform_indices = @transform_1, window_bounds = array<i64: 3, 72, 128>}, {pipeline_mode = #tpu.pipeline_mode<synchronous>, transform_indices = @transform_2, window_bounds = array<i64: 1, 128>}, {pipeline_mode = #tpu.pipeline_mode<synchronous>, transform_indices = @transform_3, window_bounds = array<i64: 1, 128>}, {pipeline_mode = #tpu.pipeline_mode<synchronous>, transform_indices = @transform_4, window_bounds = array<i64: 3, 144, 128>}, {pipeline_mode = #tpu.pipeline_mode<synchronous>, transform_indices = @transform_5, window_bounds = array<i64: 1, 128>}, {pipeline_mode = #tpu.pipeline_mode<synchronous>, transform_indices = @transform_6, window_bounds = array<i64: 1, 128>}, {transform_indices = @transform_7, window_bounds = array<i64: 1, 16, 128>}]} {
    %0 = tpu.iota {dimensions = array<i32: 0>} : vector<128x128xi32>
    %1 = tpu.iota {dimensions = array<i32: 1>} : vector<128x128xi32>
    %c8_i32 = arith.constant 8 : i32
    %c0_i32 = arith.constant 0 : i32
    %2 = arith.cmpi eq, %c8_i32, %c0_i32 : i32
    %c1_i32 = arith.constant 1 : i32
    %3 = arith.select %2, %c1_i32, %c8_i32 : i32
    %4 = vector.broadcast %3 : i32 to vector<128x128xi32>
    %5 = arith.remsi %0, %4 : vector<128x128xi32>
    %c0_i32_0 = arith.constant 0 : i32
    %6 = vector.broadcast %c0_i32_0 : i32 to vector<128x128xi32>
    %7 = arith.cmpi ne, %5, %6 : vector<128x128xi32>
    %c0_i32_1 = arith.constant 0 : i32
    %8 = vector.broadcast %c0_i32_1 : i32 to vector<128x128xi32>
    %9 = arith.cmpi slt, %5, %8 : vector<128x128xi32>
    %c0_i32_2 = arith.constant 0 : i32
    %10 = arith.cmpi slt, %3, %c0_i32_2 : i32
    %11 = vector.broadcast %10 : i1 to vector<128x128xi1>
    %12 = vector.broadcast %11 : vector<128x128xi1> to vector<128x128xi1>
    %13 = arith.xori %9, %12 : vector<128x128xi1>
    %14 = arith.andi %13, %7 : vector<128x128xi1>
    %15 = vector.broadcast %3 : i32 to vector<128x128xi32>
    %16 = arith.addi %5, %15 : vector<128x128xi32>
    %17 = arith.select %14, %16, %5 : vector<128x128xi1>, vector<128x128xi32>
    %c8_i32_3 = arith.constant 8 : i32
    %c0_i32_4 = arith.constant 0 : i32
    %18 = arith.cmpi eq, %c8_i32_3, %c0_i32_4 : i32
    %c1_i32_5 = arith.constant 1 : i32
    %19 = arith.select %18, %c1_i32_5, %c8_i32_3 : i32
    %20 = vector.broadcast %19 : i32 to vector<128x128xi32>
    %21 = arith.remsi %1, %20 : vector<128x128xi32>
    %c0_i32_6 = arith.constant 0 : i32
    %22 = vector.broadcast %c0_i32_6 : i32 to vector<128x128xi32>
    %23 = arith.cmpi ne, %21, %22 : vector<128x128xi32>
    %c0_i32_7 = arith.constant 0 : i32
    %24 = vector.broadcast %c0_i32_7 : i32 to vector<128x128xi32>
    %25 = arith.cmpi slt, %21, %24 : vector<128x128xi32>
    %c0_i32_8 = arith.constant 0 : i32
    %26 = arith.cmpi slt, %19, %c0_i32_8 : i32
    %27 = vector.broadcast %26 : i1 to vector<128x128xi1>
    %28 = vector.broadcast %27 : vector<128x128xi1> to vector<128x128xi1>
    %29 = arith.xori %25, %28 : vector<128x128xi1>
    %30 = arith.andi %29, %23 : vector<128x128xi1>
    %31 = vector.broadcast %19 : i32 to vector<128x128xi32>
    %32 = arith.addi %21, %31 : vector<128x128xi32>
    %33 = arith.select %30, %32, %21 : vector<128x128xi1>, vector<128x128xi32>
    %34 = arith.cmpi eq, %17, %33 : vector<128x128xi32>
    %35 = arith.extui %34 : vector<128x128xi1> to vector<128x128xi32>
    %36 = arith.sitofp %35 : vector<128x128xi32> to vector<128x128xf32>
    %cst = arith.constant 0.000000e+00 : f32
    %37 = vector.broadcast %cst : f32 to vector<18x72xf32>
    %c0 = arith.constant 0 : index
    %c0_9 = arith.constant 0 : index
    %38 = vector.load %arg9[%c0, %c0_9] : memref<18x72xf32, #tpu.memory_space<vmem>>, vector<18x72xf32>
    tpu.vector_store %arg9[%c0, %c0_9], %37 {strides = array<i32>} : memref<18x72xf32, #tpu.memory_space<vmem>>, vector<18x72xf32>,
    %c0_10 = arith.constant 0 : index
    %c0_11 = arith.constant 0 : index
    %c0_12 = arith.constant 0 : index
    %39 = vector.load %arg1[%c0_10, %c0_11, %c0_12] : memref<1x16x64xf32, #tpu.memory_space<vmem>>, vector<1x16x64xf32>
    %40 = vector.shape_cast %39 : vector<1x16x64xf32> to vector<16x64xf32>
    %c1 = arith.constant 1 : index
    %c4 = arith.constant 4 : index
    %41 = vector.load %arg9[%c1, %c4] : memref<18x72xf32, #tpu.memory_space<vmem>>, vector<16x64xf32>
    tpu.vector_store %arg9[%c1, %c4], %40 {strides = array<i32>} : memref<18x72xf32, #tpu.memory_space<vmem>>, vector<16x64xf32>,
    %c0_13 = arith.constant 0 : index
    %c0_14 = arith.constant 0 : index
    %42 = vector.load %arg3[%c0_13, %c0_14] : memref<1x128xf32, #tpu.memory_space<vmem>>, vector<1x128xf32>
    %c0_15 = arith.constant 0 : index
    %c0_16 = arith.constant 0 : index
    %43 = vector.load %arg4[%c0_15, %c0_16] : memref<1x128xf32, #tpu.memory_space<vmem>>, vector<1x128xf32>
    %c0_17 = arith.constant 0 : index
    %c0_18 = arith.constant 0 : index
    %44 = vector.load %arg9[%c0_17, %c0_18] : memref<18x72xf32, #tpu.memory_space<vmem>>, vector<18x72xf32>
    %cst_19 = arith.constant 0.000000e+00 : f32
    %45 = vector.broadcast %cst_19 : f32 to vector<16x128xf32>
    %46 = vector.extract_strided_slice %44 {offsets = [0, 0], sizes = [16, 72], strides = [1, 1]} : vector<18x72xf32> to vector<16x72xf32>
    %c0_20 = arith.constant 0 : index
    %c0_21 = arith.constant 0 : index
    %c0_22 = arith.constant 0 : index
    %47 = vector.load %arg2[%c0_20, %c0_21, %c0_22] : memref<3x72x128xf32, #tpu.memory_space<vmem>>, vector<1x72x128xf32>
    %48 = vector.shape_cast %47 : vector<1x72x128xf32> to vector<72x128xf32>
    %cst_23 = arith.constant dense<0.000000e+00> : vector<16x128xf32>
    %49 = tpu.matmul %46, %48, %cst_23 {dimension_numbers = #tpu.dot_dimension_numbers<[1], [0], [0], [1], [0, 0, 1, 1], [], []>} : vector<16x72xf32>, vector<72x128xf32>, vector<16x128xf32> -> vector<16x128xf32>
    %50 = arith.addf %45, %49 : vector<16x128xf32>
    %51 = vector.extract_strided_slice %44 {offsets = [1, 0], sizes = [16, 72], strides = [1, 1]} : vector<18x72xf32> to vector<16x72xf32>
    %c1_24 = arith.constant 1 : index
    %c0_25 = arith.constant 0 : index
    %c0_26 = arith.constant 0 : index
    %52 = vector.load %arg2[%c1_24, %c0_25, %c0_26] : memref<3x72x128xf32, #tpu.memory_space<vmem>>, vector<1x72x128xf32>
    %53 = vector.shape_cast %52 : vector<1x72x128xf32> to vector<72x128xf32>
    %cst_27 = arith.constant dense<0.000000e+00> : vector<16x128xf32>
    %54 = tpu.matmul %51, %53, %cst_27 {dimension_numbers = #tpu.dot_dimension_numbers<[1], [0], [0], [1], [0, 0, 1, 1], [], []>} : vector<16x72xf32>, vector<72x128xf32>, vector<16x128xf32> -> vector<16x128xf32>
    %55 = arith.addf %50, %54 : vector<16x128xf32>
    %56 = vector.extract_strided_slice %44 {offsets = [2, 0], sizes = [16, 72], strides = [1, 1]} : vector<18x72xf32> to vector<16x72xf32>
    %c2 = arith.constant 2 : index
    %c0_28 = arith.constant 0 : index
    %c0_29 = arith.constant 0 : index
    %57 = vector.load %arg2[%c2, %c0_28, %c0_29] : memref<3x72x128xf32, #tpu.memory_space<vmem>>, vector<1x72x128xf32>
    %58 = vector.shape_cast %57 : vector<1x72x128xf32> to vector<72x128xf32>
    %cst_30 = arith.constant dense<0.000000e+00> : vector<16x128xf32>
    %59 = tpu.matmul %56, %58, %cst_30 {dimension_numbers = #tpu.dot_dimension_numbers<[1], [0], [0], [1], [0, 0, 1, 1], [], []>} : vector<16x72xf32>, vector<72x128xf32>, vector<16x128xf32> -> vector<16x128xf32>
    %60 = arith.addf %55, %59 : vector<16x128xf32>
    %cst_31 = arith.constant dense<0.000000e+00> : vector<16x128xf32>
    %61 = tpu.matmul %60, %36, %cst_31 {dimension_numbers = #tpu.dot_dimension_numbers<[1], [0], [0], [1], [0, 0, 1, 1], [], []>} : vector<16x128xf32>, vector<128x128xf32>, vector<16x128xf32> -> vector<16x128xf32>
    %cst_32 = arith.constant dense<0.000000e+00> : vector<128xf32>
    %62 = vector.multi_reduction <add>, %61, %cst_32 [0] : vector<16x128xf32> to vector<128xf32>
    %63 = vector.shape_cast %62 : vector<128xf32> to vector<1x128xf32>
    %64 = arith.mulf %60, %60 : vector<16x128xf32>
    %cst_33 = arith.constant dense<0.000000e+00> : vector<16x128xf32>
    %65 = tpu.matmul %64, %36, %cst_33 {dimension_numbers = #tpu.dot_dimension_numbers<[1], [0], [0], [1], [0, 0, 1, 1], [], []>} : vector<16x128xf32>, vector<128x128xf32>, vector<16x128xf32> -> vector<16x128xf32>
    %cst_34 = arith.constant dense<0.000000e+00> : vector<128xf32>
    %66 = vector.multi_reduction <add>, %65, %cst_34 [0] : vector<16x128xf32> to vector<128xf32>
    %67 = vector.shape_cast %66 : vector<128xf32> to vector<1x128xf32>
    %cst_35 = arith.constant 3.906250e-03 : f32
    %68 = vector.broadcast %cst_35 : f32 to vector<1x128xf32>
    %69 = arith.mulf %63, %68 : vector<1x128xf32>
    %cst_36 = arith.constant 3.906250e-03 : f32
    %70 = vector.broadcast %cst_36 : f32 to vector<1x128xf32>
    %71 = arith.mulf %67, %70 : vector<1x128xf32>
    %72 = arith.mulf %69, %69 : vector<1x128xf32>
    %73 = arith.subf %71, %72 : vector<1x128xf32>
    %cst_37 = arith.constant 9.99999974E-6 : f32
    %74 = vector.broadcast %cst_37 : f32 to vector<1x128xf32>
    %75 = arith.addf %73, %74 : vector<1x128xf32>
    %76 = math.rsqrt %75 : vector<1x128xf32>
    %77 = arith.mulf %42, %76 : vector<1x128xf32>
    %78 = arith.mulf %69, %77 : vector<1x128xf32>
    %79 = arith.subf %43, %78 : vector<1x128xf32>
    %80 = vector.broadcast %77 : vector<1x128xf32> to vector<16x128xf32>
    %81 = arith.mulf %60, %80 : vector<16x128xf32>
    %82 = vector.broadcast %79 : vector<1x128xf32> to vector<16x128xf32>
    %83 = arith.addf %81, %82 : vector<16x128xf32>
    %cst_38 = arith.constant 0.000000e+00 : f32
    %84 = vector.broadcast %cst_38 : f32 to vector<16x128xf32>
    %85 = arith.cmpf oge, %83, %84 : vector<16x128xf32>
    %cst_39 = arith.constant 0.00999999977 : f32
    %86 = vector.broadcast %cst_39 : f32 to vector<16x128xf32>
    %87 = arith.mulf %86, %83 : vector<16x128xf32>
    %88 = arith.select %85, %83, %87 : vector<16x128xi1>, vector<16x128xf32>
    %cst_40 = arith.constant 0.000000e+00 : f32
    %89 = vector.broadcast %cst_40 : f32 to vector<18x144xf32>
    %c0_41 = arith.constant 0 : index
    %c0_42 = arith.constant 0 : index
    %90 = vector.load %arg10[%c0_41, %c0_42] : memref<18x144xf32, #tpu.memory_space<vmem>>, vector<18x144xf32>
    tpu.vector_store %arg10[%c0_41, %c0_42], %89 {strides = array<i32>} : memref<18x144xf32, #tpu.memory_space<vmem>>, vector<18x144xf32>,
    %c1_43 = arith.constant 1 : index
    %c8 = arith.constant 8 : index
    %91 = vector.load %arg10[%c1_43, %c8] : memref<18x144xf32, #tpu.memory_space<vmem>>, vector<16x128xf32>
    tpu.vector_store %arg10[%c1_43, %c8], %88 {strides = array<i32>} : memref<18x144xf32, #tpu.memory_space<vmem>>, vector<16x128xf32>,
    %c0_44 = arith.constant 0 : index
    %c0_45 = arith.constant 0 : index
    %92 = vector.load %arg6[%c0_44, %c0_45] : memref<1x128xf32, #tpu.memory_space<vmem>>, vector<1x128xf32>
    %c0_46 = arith.constant 0 : index
    %c0_47 = arith.constant 0 : index
    %93 = vector.load %arg7[%c0_46, %c0_47] : memref<1x128xf32, #tpu.memory_space<vmem>>, vector<1x128xf32>
    %c0_48 = arith.constant 0 : index
    %c0_49 = arith.constant 0 : index
    %94 = vector.load %arg10[%c0_48, %c0_49] : memref<18x144xf32, #tpu.memory_space<vmem>>, vector<18x144xf32>
    %cst_50 = arith.constant 0.000000e+00 : f32
    %95 = vector.broadcast %cst_50 : f32 to vector<16x128xf32>
    %96 = vector.extract_strided_slice %94 {offsets = [0, 0], sizes = [16, 144], strides = [1, 1]} : vector<18x144xf32> to vector<16x144xf32>
    %c0_51 = arith.constant 0 : index
    %c0_52 = arith.constant 0 : index
    %c0_53 = arith.constant 0 : index
    %97 = vector.load %arg5[%c0_51, %c0_52, %c0_53] : memref<3x144x128xf32, #tpu.memory_space<vmem>>, vector<1x144x128xf32>
    %98 = vector.shape_cast %97 : vector<1x144x128xf32> to vector<144x128xf32>
    %cst_54 = arith.constant dense<0.000000e+00> : vector<16x128xf32>
    %99 = tpu.matmul %96, %98, %cst_54 {dimension_numbers = #tpu.dot_dimension_numbers<[1], [0], [0], [1], [0, 0, 1, 1], [], []>} : vector<16x144xf32>, vector<144x128xf32>, vector<16x128xf32> -> vector<16x128xf32>
    %100 = arith.addf %95, %99 : vector<16x128xf32>
    %101 = vector.extract_strided_slice %94 {offsets = [1, 0], sizes = [16, 144], strides = [1, 1]} : vector<18x144xf32> to vector<16x144xf32>
    %c1_55 = arith.constant 1 : index
    %c0_56 = arith.constant 0 : index
    %c0_57 = arith.constant 0 : index
    %102 = vector.load %arg5[%c1_55, %c0_56, %c0_57] : memref<3x144x128xf32, #tpu.memory_space<vmem>>, vector<1x144x128xf32>
    %103 = vector.shape_cast %102 : vector<1x144x128xf32> to vector<144x128xf32>
    %cst_58 = arith.constant dense<0.000000e+00> : vector<16x128xf32>
    %104 = tpu.matmul %101, %103, %cst_58 {dimension_numbers = #tpu.dot_dimension_numbers<[1], [0], [0], [1], [0, 0, 1, 1], [], []>} : vector<16x144xf32>, vector<144x128xf32>, vector<16x128xf32> -> vector<16x128xf32>
    %105 = arith.addf %100, %104 : vector<16x128xf32>
    %106 = vector.extract_strided_slice %94 {offsets = [2, 0], sizes = [16, 144], strides = [1, 1]} : vector<18x144xf32> to vector<16x144xf32>
    %c2_59 = arith.constant 2 : index
    %c0_60 = arith.constant 0 : index
    %c0_61 = arith.constant 0 : index
    %107 = vector.load %arg5[%c2_59, %c0_60, %c0_61] : memref<3x144x128xf32, #tpu.memory_space<vmem>>, vector<1x144x128xf32>
    %108 = vector.shape_cast %107 : vector<1x144x128xf32> to vector<144x128xf32>
    %cst_62 = arith.constant dense<0.000000e+00> : vector<16x128xf32>
    %109 = tpu.matmul %106, %108, %cst_62 {dimension_numbers = #tpu.dot_dimension_numbers<[1], [0], [0], [1], [0, 0, 1, 1], [], []>} : vector<16x144xf32>, vector<144x128xf32>, vector<16x128xf32> -> vector<16x128xf32>
    %110 = arith.addf %105, %109 : vector<16x128xf32>
    %cst_63 = arith.constant dense<0.000000e+00> : vector<16x128xf32>
    %111 = tpu.matmul %110, %36, %cst_63 {dimension_numbers = #tpu.dot_dimension_numbers<[1], [0], [0], [1], [0, 0, 1, 1], [], []>} : vector<16x128xf32>, vector<128x128xf32>, vector<16x128xf32> -> vector<16x128xf32>
    %cst_64 = arith.constant dense<0.000000e+00> : vector<128xf32>
    %112 = vector.multi_reduction <add>, %111, %cst_64 [0] : vector<16x128xf32> to vector<128xf32>
    %113 = vector.shape_cast %112 : vector<128xf32> to vector<1x128xf32>
    %114 = arith.mulf %110, %110 : vector<16x128xf32>
    %cst_65 = arith.constant dense<0.000000e+00> : vector<16x128xf32>
    %115 = tpu.matmul %114, %36, %cst_65 {dimension_numbers = #tpu.dot_dimension_numbers<[1], [0], [0], [1], [0, 0, 1, 1], [], []>} : vector<16x128xf32>, vector<128x128xf32>, vector<16x128xf32> -> vector<16x128xf32>
    %cst_66 = arith.constant dense<0.000000e+00> : vector<128xf32>
    %116 = vector.multi_reduction <add>, %115, %cst_66 [0] : vector<16x128xf32> to vector<128xf32>
    %117 = vector.shape_cast %116 : vector<128xf32> to vector<1x128xf32>
    %cst_67 = arith.constant 3.906250e-03 : f32
    %118 = vector.broadcast %cst_67 : f32 to vector<1x128xf32>
    %119 = arith.mulf %113, %118 : vector<1x128xf32>
    %cst_68 = arith.constant 3.906250e-03 : f32
    %120 = vector.broadcast %cst_68 : f32 to vector<1x128xf32>
    %121 = arith.mulf %117, %120 : vector<1x128xf32>
    %122 = arith.mulf %119, %119 : vector<1x128xf32>
    %123 = arith.subf %121, %122 : vector<1x128xf32>
    %cst_69 = arith.constant 9.99999974E-6 : f32
    %124 = vector.broadcast %cst_69 : f32 to vector<1x128xf32>
    %125 = arith.addf %123, %124 : vector<1x128xf32>
    %126 = math.rsqrt %125 : vector<1x128xf32>
    %127 = arith.mulf %92, %126 : vector<1x128xf32>
    %128 = arith.mulf %119, %127 : vector<1x128xf32>
    %129 = arith.subf %93, %128 : vector<1x128xf32>
    %130 = vector.broadcast %127 : vector<1x128xf32> to vector<16x128xf32>
    %131 = arith.mulf %110, %130 : vector<16x128xf32>
    %132 = vector.broadcast %129 : vector<1x128xf32> to vector<16x128xf32>
    %133 = arith.addf %131, %132 : vector<16x128xf32>
    %cst_70 = arith.constant 0.000000e+00 : f32
    %134 = vector.broadcast %cst_70 : f32 to vector<16x128xf32>
    %135 = arith.cmpf oge, %133, %134 : vector<16x128xf32>
    %cst_71 = arith.constant 0.00999999977 : f32
    %136 = vector.broadcast %cst_71 : f32 to vector<16x128xf32>
    %137 = arith.mulf %136, %133 : vector<16x128xf32>
    %138 = arith.select %135, %133, %137 : vector<16x128xi1>, vector<16x128xf32>
    %c0_72 = arith.constant 0 : index
    %c0_73 = arith.constant 0 : index
    %c0_74 = arith.constant 0 : index
    %139 = vector.load %arg8[%c0_72, %c0_73, %c0_74] : memref<1x16x128xf32, #tpu.memory_space<vmem>>, vector<1x16x128xf32>
    %140 = vector.shape_cast %139 : vector<1x16x128xf32> to vector<16x128xf32>
    %141 = vector.shape_cast %138 : vector<16x128xf32> to vector<1x16x128xf32>
    tpu.vector_store %arg8[%c0_72, %c0_73, %c0_74], %141 {strides = array<i32>} : memref<1x16x128xf32, #tpu.memory_space<vmem>>, vector<1x16x128xf32>,
    return
  }
  func.func @transform_0(%arg0: i32) -> (i32, i32, i32) {
    %c0_i32 = arith.constant 0 : i32
    %c0_i32_0 = arith.constant 0 : i32
    %c0_i32_1 = arith.constant 0 : i32
    return %arg0, %c0_i32, %c0_i32_0 : i32, i32, i32
  }
  func.func @transform_1(%arg0: i32) -> (i32, i32, i32) {
    %c0_i32 = arith.constant 0 : i32
    %c0_i32_0 = arith.constant 0 : i32
    %c0_i32_1 = arith.constant 0 : i32
    %c0_i32_2 = arith.constant 0 : i32
    return %c0_i32, %c0_i32_0, %c0_i32_1 : i32, i32, i32
  }
  func.func @transform_2(%arg0: i32) -> (i32, i32) {
    %c0_i32 = arith.constant 0 : i32
    %c0_i32_0 = arith.constant 0 : i32
    %c0_i32_1 = arith.constant 0 : i32
    return %c0_i32, %c0_i32_0 : i32, i32
  }
  func.func @transform_3(%arg0: i32) -> (i32, i32) {
    %c0_i32 = arith.constant 0 : i32
    %c0_i32_0 = arith.constant 0 : i32
    %c0_i32_1 = arith.constant 0 : i32
    return %c0_i32, %c0_i32_0 : i32, i32
  }
  func.func @transform_4(%arg0: i32) -> (i32, i32, i32) {
    %c0_i32 = arith.constant 0 : i32
    %c0_i32_0 = arith.constant 0 : i32
    %c0_i32_1 = arith.constant 0 : i32
    %c0_i32_2 = arith.constant 0 : i32
    return %c0_i32, %c0_i32_0, %c0_i32_1 : i32, i32, i32
  }
  func.func @transform_5(%arg0: i32) -> (i32, i32) {
    %c0_i32 = arith.constant 0 : i32
    %c0_i32_0 = arith.constant 0 : i32
    %c0_i32_1 = arith.constant 0 : i32
    return %c0_i32, %c0_i32_0 : i32, i32
  }
  func.func @transform_6(%arg0: i32) -> (i32, i32) {
    %c0_i32 = arith.constant 0 : i32
    %c0_i32_0 = arith.constant 0 : i32
    %c0_i32_1 = arith.constant 0 : i32
    return %c0_i32, %c0_i32_0 : i32, i32
  }
  func.func @transform_7(%arg0: i32) -> (i32, i32, i32) {
    %c0_i32 = arith.constant 0 : i32
    %c0_i32_0 = arith.constant 0 : i32
    %c0_i32_1 = arith.constant 0 : i32
    return %arg0, %c0_i32, %c0_i32_0 : i32, i32, i32
  }
}

</mosaic_0001>

<llo_original>
// kernel: stacked_conv_layers_pallas.1
$region0: #{stacked_conv_layers_pallas.1}
  #allocation0 [shape = 'u32[]', space=smem, size = 0x4, offset = 0x4, fixed_abs, tag = 'smem constant byte address 0x4 - core index']
  #allocation1 [shape = 'u32[144,128]{1,0:T(1,128)}', space=vmem, size = 0x12000, scoped, tag = 'internal scratch']
  #allocation2 [shape = 'f32[18,72]{1,0:T(8,128)}', space=vmem, size = 0x3000, scoped, tag = 'scratch operand']
  #allocation3 [shape = 'f32[18,144]{1,0:T(8,128)}', space=vmem, size = 0x6000, scoped, tag = 'scratch operand']
  %s0 = inlined_call_operand.vmem [shape: f32[2,16,64], index: 0, kind: input, shape index: {}]
  %s1 = inlined_call_operand.vmem [shape: f32[3,72,128], index: 1, kind: input, shape index: {}]
  %s2 = inlined_call_operand.vmem [shape: f32[1,128], index: 2, kind: input, shape index: {}]
  %s3 = inlined_call_operand.vmem [shape: f32[1,128], index: 3, kind: input, shape index: {}]
  %s4 = inlined_call_operand.vmem [shape: f32[3,144,128], index: 4, kind: input, shape index: {}]
  %s5 = inlined_call_operand.vmem [shape: f32[1,128], index: 5, kind: input, shape index: {}]
  %s6 = inlined_call_operand.vmem [shape: f32[1,128], index: 6, kind: input, shape index: {}]
  %s7 = inlined_call_operand.vmem [shape: f32[2,16,128], index: 7, kind: output, shape index: {}]
  %s8 = sld [smem:[#allocation0]]
  $region61: #{stacked_conv_layers_pallas.1} parent=0
    _
  %s10 = ssub.s32 1, %s8
  %s11 = scalar_select 0, %s10, %s8
  loop: start=0, step=1, limit=4
  $region2: #{stacked_conv_layers_pallas.1} parent=0 // loop_pre_header
    _
  $region3: #{stacked_conv_layers_pallas.1} parent=0 // loop_header
    %s13 = sphi 0, %s17
    %p14 = scmp.ge.s32.totalorder %s13, 4
    %s23 = sphi 0, %s25
    %s26 = sphi 0, %s23
    %s27 = sphi 0, %s26
    %s43 = sphi 0, %s27
    %s47 = sphi 0, %s47
    %s49 = sphi 0, %s47
    %s50 = sphi 0, %s49
    %s64 = sphi 0, %s50
    %s68 = sphi 0, %s68
    %s70 = sphi 0, %s68
    %s71 = sphi 0, %s70
    %s85 = sphi 0, %s71
    %s89 = sphi 0, %s89
    %s91 = sphi 0, %s89
    %s92 = sphi 0, %s91
    %s106 = sphi 0, %s92
    %s110 = sphi 0, %s110
    %s112 = sphi 0, %s110
    %s113 = sphi 0, %s112
    %s127 = sphi 0, %s113
    %s131 = sphi 0, %s131
    %s133 = sphi 0, %s131
    %s134 = sphi 0, %s133
    %s148 = sphi 0, %s134
    %s152 = sphi 0, %s152
    %s154 = sphi 0, %s152
    %s155 = sphi 0, %s154
    %s169 = sphi 0, %s155
    %s175 = sphi 0, %s177
    %s178 = sphi 0, %s175
    %s179 = sphi 0, %s178
    %s195 = sphi 0, %s179
  $region4: #{stacked_conv_layers_pallas.1} parent=0 // loop_header_branch
    %16 = sbr.rel (%p14) target = $region8
  $region5: #{stacked_conv_layers_pallas.1} parent=0 // loop_body
    %s18 = ssub.s32 %s13, 1
    %s19 = ssub.s32 %s13, 2
    %s20 = sadd.s32 %s13, 1
    %s21 = ssub.s32 %s13, %s20
    %p22 = scmp.eq.s32.totalorder %s21, 0
    %s24 = sadd.s32 %s23, 1
    %s25 = scalar_select %p22, %s23, %s24
    %p28 = pneg %p22
    %p29 = scmp.eq.s32.totalorder %s13, 1
    %p30 = por %p28, %p29
    %p31 = scmp.ne.s32.totalorder %s23, %s26
    %p32 = scmp.eq.s32.totalorder %s13, 0
    %p33 = por %p31, %p32
    %p34 = scmp.ne.s32.totalorder %s23, %s26
    %p35 = scmp.eq.s32.totalorder %s18, 1
    %p36 = por %p34, %p35
    %p37 = scmp.ne.s32.totalorder %s26, %s27
    %p38 = scmp.eq.s32.totalorder %s18, 0
    %p39 = por %p37, %p38
    %p40 = scmp.ne.s32.totalorder %s26, %s27
    %p41 = scmp.eq.s32.totalorder %s19, 1
    %p42 = por %p40, %p41
    %p44 = scmp.ne.s32.totalorder %s27, %s43
    %p45 = scmp.eq.s32.totalorder %s19, 0
    %p46 = por %p44, %p45
    %s48 = sadd.s32 %s47, 1
    %p51 = scmp.eq.s32.totalorder %s13, 1
    %p52 = scmp.ne.s32.totalorder %s47, %s49
    %p53 = scmp.eq.s32.totalorder %s13, 0
    %p54 = por %p52, %p53
    %p55 = scmp.ne.s32.totalorder %s47, %s49
    %p56 = scmp.eq.s32.totalorder %s18, 1
    %p57 = por %p55, %p56
    %p58 = scmp.ne.s32.totalorder %s49, %s50
    %p59 = scmp.eq.s32.totalorder %s18, 0
    %p60 = por %p58, %p59
    %p61 = scmp.ne.s32.totalorder %s49, %s50
    %p62 = scmp.eq.s32.totalorder %s19, 1
    %p63 = por %p61, %p62
    %p65 = scmp.ne.s32.totalorder %s50, %s64
    %p66 = scmp.eq.s32.totalorder %s19, 0
    %p67 = por %p65, %p66
    %s69 = sadd.s32 %s68, 1
    %p72 = scmp.eq.s32.totalorder %s13, 1
    %p73 = scmp.ne.s32.totalorder %s68, %s70
    %p74 = scmp.eq.s32.totalorder %s13, 0
    %p75 = por %p73, %p74
    %p76 = scmp.ne.s32.totalorder %s68, %s70
    %p77 = scmp.eq.s32.totalorder %s18, 1
    %p78 = por %p76, %p77
    %p79 = scmp.ne.s32.totalorder %s70, %s71
    %p80 = scmp.eq.s32.totalorder %s18, 0
    %p81 = por %p79, %p80
    %p82 = scmp.ne.s32.totalorder %s70, %s71
    %p83 = scmp.eq.s32.totalorder %s19, 1
    %p84 = por %p82, %p83
    %p86 = scmp.ne.s32.totalorder %s71, %s85
    %p87 = scmp.eq.s32.totalorder %s19, 0
    %p88 = por %p86, %p87
    %s90 = sadd.s32 %s89, 1
    %p93 = scmp.eq.s32.totalorder %s13, 1
    %p94 = scmp.ne.s32.totalorder %s89, %s91
    %p95 = scmp.eq.s32.totalorder %s13, 0
    %p96 = por %p94, %p95
    %p97 = scmp.ne.s32.totalorder %s89, %s91
    %p98 = scmp.eq.s32.totalorder %s18, 1
    %p99 = por %p97, %p98
    %p100 = scmp.ne.s32.totalorder %s91, %s92
    %p101 = scmp.eq.s32.totalorder %s18, 0
    %p102 = por %p100, %p101
    %p103 = scmp.ne.s32.totalorder %s91, %s92
    %p104 = scmp.eq.s32.totalorder %s19, 1
    %p105 = por %p103, %p104
    %p107 = scmp.ne.s32.totalorder %s92, %s106
    %p108 = scmp.eq.s32.totalorder %s19, 0
    %p109 = por %p107, %p108
    %s111 = sadd.s32 %s110, 1
    %p114 = scmp.eq.s32.totalorder %s13, 1
    %p115 = scmp.ne.s32.totalorder %s110, %s112
    %p116 = scmp.eq.s32.totalorder %s13, 0
    %p117 = por %p115, %p116
    %p118 = scmp.ne.s32.totalorder %s110, %s112
    %p119 = scmp.eq.s32.totalorder %s18, 1
    %p120 = por %p118, %p119
    %p121 = scmp.ne.s32.totalorder %s112, %s113
    %p122 = scmp.eq.s32.totalorder %s18, 0
    %p123 = por %p121, %p122
    %p124 = scmp.ne.s32.totalorder %s112, %s113
    %p125 = scmp.eq.s32.totalorder %s19, 1
    %p126 = por %p124, %p125
    %p128 = scmp.ne.s32.totalorder %s113, %s127
    %p129 = scmp.eq.s32.totalorder %s19, 0
    %p130 = por %p128, %p129
    %s132 = sadd.s32 %s131, 1
    %p135 = scmp.eq.s32.totalorder %s13, 1
    %p136 = scmp.ne.s32.totalorder %s131, %s133
    %p137 = scmp.eq.s32.totalorder %s13, 0
    %p138 = por %p136, %p137
    %p139 = scmp.ne.s32.totalorder %s131, %s133
    %p140 = scmp.eq.s32.totalorder %s18, 1
    %p141 = por %p139, %p140
    %p142 = scmp.ne.s32.totalorder %s133, %s134
    %p143 = scmp.eq.s32.totalorder %s18, 0
    %p144 = por %p142, %p143
    %p145 = scmp.ne.s32.totalorder %s133, %s134
    %p146 = scmp.eq.s32.totalorder %s19, 1
    %p147 = por %p145, %p146
    %p149 = scmp.ne.s32.totalorder %s134, %s148
    %p150 = scmp.eq.s32.totalorder %s19, 0
    %p151 = por %p149, %p150
    %s153 = sadd.s32 %s152, 1
    %p156 = scmp.eq.s32.totalorder %s13, 1
    %p157 = scmp.ne.s32.totalorder %s152, %s154
    %p158 = scmp.eq.s32.totalorder %s13, 0
    %p159 = por %p157, %p158
    %p160 = scmp.ne.s32.totalorder %s152, %s154
    %p161 = scmp.eq.s32.totalorder %s18, 1
    %p162 = por %p160, %p161
    %p163 = scmp.ne.s32.totalorder %s154, %s155
    %p164 = scmp.eq.s32.totalorder %s18, 0
    %p165 = por %p163, %p164
    %p166 = scmp.ne.s32.totalorder %s154, %s155
    %p167 = scmp.eq.s32.totalorder %s19, 1
    %p168 = por %p166, %p167
    %p170 = scmp.ne.s32.totalorder %s155, %s169
    %p171 = scmp.eq.s32.totalorder %s19, 0
    %p172 = por %p170, %p171
    %s173 = ssub.s32 %s13, %s20
    %p174 = scmp.eq.s32.totalorder %s173, 0
    %s176 = sadd.s32 %s175, 1
    %s177 = scalar_select %p174, %s175, %s176
    %p180 = pneg %p174
    %p181 = scmp.eq.s32.totalorder %s13, 1
    %p182 = por %p180, %p181
    %p183 = scmp.ne.s32.totalorder %s175, %s178
    %p184 = scmp.eq.s32.totalorder %s13, 0
    %p185 = por %p183, %p184
    %p186 = scmp.ne.s32.totalorder %s175, %s178
    %p187 = scmp.eq.s32.totalorder %s18, 1
    %p188 = por %p186, %p187
    %p189 = scmp.ne.s32.totalorder %s178, %s179
    %p190 = scmp.eq.s32.totalorder %s18, 0
    %p191 = por %p189, %p190
    %p192 = scmp.ne.s32.totalorder %s178, %s179
    %p193 = scmp.eq.s32.totalorder %s19, 1
    %p194 = por %p192, %p193
    %p196 = scmp.ne.s32.totalorder %s179, %s195
    %p197 = scmp.eq.s32.totalorder %s19, 0
    %p198 = por %p196, %p197
    %p199 = scmp.le.s32.totalorder 1, %s13
    %p200 = scmp.lt.s32.totalorder %s13, 3
    %p201 = pnand %p199, %p200
    %p202 = pneg %p201
    // Predicated region
    $region9: #{stacked_conv_layers_pallas.1} parent=5 // pred_check
      _
    $region10: #{stacked_conv_layers_pallas.1} parent=5 // pred_check_branch
      %204 = sbr.rel (%p201) target = $region12
    $region11: #{stacked_conv_layers_pallas.1} parent=5 // pred_region
      %s205 = ssub.s32 %s13, 1
      // Predicated region
      $region13: #{stacked_conv_layers_pallas.1} parent=11 // pred_check
        %p206 = pneg %p60
      $region14: #{stacked_conv_layers_pallas.1} parent=11 // pred_check_branch
        %208 = sbr.rel (%p206) target = $region16
      $region15: #{stacked_conv_layers_pallas.1} parent=11 // pred_region
        _
      $region16: #{stacked_conv_layers_pallas.1} parent=11 // pred_fallthru
        _
      // Predicated region
      $region17: #{stacked_conv_layers_pallas.1} parent=11 // pred_check
        %p209 = pneg %p81
      $region18: #{stacked_conv_layers_pallas.1} parent=11 // pred_check_branch
        %211 = sbr.rel (%p209) target = $region20
      $region19: #{stacked_conv_layers_pallas.1} parent=11 // pred_region
        _
      $region20: #{stacked_conv_layers_pallas.1} parent=11 // pred_fallthru
        _
      // Predicated region
      $region21: #{stacked_conv_layers_pallas.1} parent=11 // pred_check
        %p212 = pneg %p102
      $region22: #{stacked_conv_layers_pallas.1} parent=11 // pred_check_branch
        %214 = sbr.rel (%p212) target = $region24
      $region23: #{stacked_conv_layers_pallas.1} parent=11 // pred_region
        _
      $region24: #{stacked_conv_layers_pallas.1} parent=11 // pred_fallthru
        _
      // Predicated region
      $region25: #{stacked_conv_layers_pallas.1} parent=11 // pred_check
        %p215 = pneg %p123
      $region26: #{stacked_conv_layers_pallas.1} parent=11 // pred_check_branch
        %217 = sbr.rel (%p215) target = $region28
      $region27: #{stacked_conv_layers_pallas.1} parent=11 // pred_region
        _
      $region28: #{stacked_conv_layers_pallas.1} parent=11 // pred_fallthru
        _
      // Predicated region
      $region29: #{stacked_conv_layers_pallas.1} parent=11 // pred_check
        %p218 = pneg %p144
      $region30: #{stacked_conv_layers_pallas.1} parent=11 // pred_check_branch
        %220 = sbr.rel (%p218) target = $region32
      $region31: #{stacked_conv_layers_pallas.1} parent=11 // pred_region
        _
      $region32: #{stacked_conv_layers_pallas.1} parent=11 // pred_fallthru
        _
      // Predicated region
      $region33: #{stacked_conv_layers_pallas.1} parent=11 // pred_check
        %p221 = pneg %p165
      $region34: #{stacked_conv_layers_pallas.1} parent=11 // pred_check_branch
        %223 = sbr.rel (%p221) target = $region36
      $region35: #{stacked_conv_layers_pallas.1} parent=11 // pred_region
        _
      $region36: #{stacked_conv_layers_pallas.1} parent=11 // pred_fallthru
        _
    $region12: #{stacked_conv_layers_pallas.1} parent=5 // pred_fallthru
      _
    %p224 = scmp.lt.s32.totalorder %s13, 2
    // Predicated region
    $region37: #{stacked_conv_layers_pallas.1} parent=5 // pred_check
      %p225 = pneg %p224
    $region38: #{stacked_conv_layers_pallas.1} parent=5 // pred_check_branch
      %227 = sbr.rel (%p225) target = $region40
    $region39: #{stacked_conv_layers_pallas.1} parent=5 // pred_region
      // Predicated region
      $region41: #{stacked_conv_layers_pallas.1} parent=39 // pred_check
        %p228 = pneg %p33
      $region42: #{stacked_conv_layers_pallas.1} parent=39 // pred_check_branch
        %230 = sbr.rel (%p228) target = $region44
      $region43: #{stacked_conv_layers_pallas.1} parent=39 // pred_region
        %p231 = scmp.lt.s32.totalorder %s13, 1
        %s232 = scalar_select %p231, %s13, 1
        %s233 = smul.addr %s232, 2
        %s234 = smul.addr %s233, 8
        %s235 = scalar_lea.vmem %s0, %s234
      $region44: #{stacked_conv_layers_pallas.1} parent=39 // pred_fallthru
        _
    $region40: #{stacked_conv_layers_pallas.1} parent=5 // pred_fallthru
      _
    %p236 = scmp.le.s32.totalorder 1, %s13
    %p237 = scmp.lt.s32.totalorder %s13, 3
    %p238 = pnand %p236, %p237
    %p239 = pneg %p238
    // Predicated region
    $region45: #{stacked_conv_layers_pallas.1} parent=5 // pred_check
      _
    $region46: #{stacked_conv_layers_pallas.1} parent=5 // pred_check_branch
      %241 = sbr.rel (%p238) target = $region48
    $region47: #{stacked_conv_layers_pallas.1} parent=5 // pred_region
      %s242 = ssub.s32 %s13, 1
      %p243 = scmp.lt.s32.totalorder %s18, 1
      %s244 = scalar_select %p243, %s18, 1
      %s245 = smul.addr %s244, 2
      %s246 = smul.addr %s245, 8
      %s247 = scalar_lea.vmem %s0, %s246
      %p248 = pneg %p39
      %p249 = pneg %p36
      %p250 = pneg %p60
      %p251 = pneg %p57
      %p252 = pneg %p81
      %p253 = pneg %p78
      %p254 = pneg %p102
      %p255 = pneg %p99
      %p256 = pneg %p123
      %p257 = pneg %p120
      %p258 = pneg %p144
      %p259 = pneg %p141
      %p260 = pneg %p165
      %p261 = pneg %p162
      %p262 = pneg %p191
      %p263 = pneg %p188
      %p264 = scmp.lt.s32.totalorder %s18, 1
      %s265 = scalar_select %p264, %s18, 1
      %s266 = smul.addr %s265, 2
      %s267 = smul.addr %s266, 8
      %s268 = scalar_lea.vmem %s7, %s267
      %p269 = scmp.lt.s32.totalorder %s18, 1
      %s270 = scalar_select %p269, %s18, 1
      %s271 = smul.addr %s270, 2
      %s272 = smul.addr %s271, 8
      %s273 = scalar_lea.vmem %s0, %s272
      %p274 = scmp.lt.s32.totalorder %s18, 1
      %s275 = scalar_select %p274, %s18, 1
      %s276 = smul.addr %s275, 2
      %s277 = smul.addr %s276, 8
      %s278 = scalar_lea.vmem %s7, %s277
      %v279 = vlaneseq
      %v280 = vshrl.u32 %v279, 7
      %v281 = vadd.s32 %v280, 8
      %v282 = vadd.s32 %v280, 16
      %v283 = vadd.s32 %v280, 24
      %v284 = vadd.s32 %v280, 32
      %v285 = vadd.s32 %v280, 40
      %v286 = vadd.s32 %v280, 48
      %v287 = vadd.s32 %v280, 56
      %v288 = vadd.s32 %v280, 64
      %v289 = vadd.s32 %v280, 72
      %v290 = vadd.s32 %v280, 80
      %v291 = vadd.s32 %v280, 88
      %v292 = vadd.s32 %v280, 96
      %v293 = vadd.s32 %v280, 104
      %v294 = vadd.s32 %v280, 112
      %v295 = vadd.s32 %v280, 120
      %v296 = vlaneseq
      %v297 = vand.u32 %v296, 127
      %vm298 = vcmp.lt.s32.totalorder %v280, 0
      %v299 = vsub.s32 0, %v280
      %v300 = vsel %vm298, %v299, %v280
      %v301 = vshrl.u32 %v300, 3
      %v302 = vand.u32 %v300, 7
      %v303 = vsub.s32 0, %v302
      %v304 = vsel %vm298, %v303, %v302
      %vm305 = vcmp.lt.s32.totalorder %v281, 0
      %v306 = vsub.s32 0, %v281
      %v307 = vsel %vm305, %v306, %v281
      %v308 = vshrl.u32 %v307, 3
      %v309 = vand.u32 %v307, 7
      %v310 = vsub.s32 0, %v309
      %v311 = vsel %vm305, %v310, %v309
      %vm312 = vcmp.lt.s32.totalorder %v282, 0
      %v313 = vsub.s32 0, %v282
      %v314 = vsel %vm312, %v313, %v282
      %v315 = vshrl.u32 %v314, 3
      %v316 = vand.u32 %v314, 7
      %v317 = vsub.s32 0, %v316
      %v318 = vsel %vm312, %v317, %v316
      %vm319 = vcmp.lt.s32.totalorder %v283, 0
      %v320 = vsub.s32 0, %v283
      %v321 = vsel %vm319, %v320, %v283
      %v322 = vshrl.u32 %v321, 3
      %v323 = vand.u32 %v321, 7
      %v324 = vsub.s32 0, %v323
      %v325 = vsel %vm319, %v324, %v323
      %vm326 = vcmp.lt.s32.totalorder %v284, 0
      %v327 = vsub.s32 0, %v284
      %v328 = vsel %vm326, %v327, %v284
      %v329 = vshrl.u32 %v328, 3
      %v330 = vand.u32 %v328, 7
      %v331 = vsub.s32 0, %v330
      %v332 = vsel %vm326, %v331, %v330
      %vm333 = vcmp.lt.s32.totalorder %v285, 0
      %v334 = vsub.s32 0, %v285
      %v335 = vsel %vm333, %v334, %v285
      %v336 = vshrl.u32 %v335, 3
      %v337 = vand.u32 %v335, 7
      %v338 = vsub.s32 0, %v337
      %v339 = vsel %vm333, %v338, %v337
      %vm340 = vcmp.lt.s32.totalorder %v286, 0
      %v341 = vsub.s32 0, %v286
      %v342 = vsel %vm340, %v341, %v286
      %v343 = vshrl.u32 %v342, 3
      %v344 = vand.u32 %v342, 7
      %v345 = vsub.s32 0, %v344
      %v346 = vsel %vm340, %v345, %v344
      %vm347 = vcmp.lt.s32.totalorder %v287, 0
      %v348 = vsub.s32 0, %v287
      %v349 = vsel %vm347, %v348, %v287
      %v350 = vshrl.u32 %v349, 3
      %v351 = vand.u32 %v349, 7
      %v352 = vsub.s32 0, %v351
      %v353 = vsel %vm347, %v352, %v351
      %vm354 = vcmp.lt.s32.totalorder %v288, 0
      %v355 = vsub.s32 0, %v288
      %v356 = vsel %vm354, %v355, %v288
      %v357 = vshrl.u32 %v356, 3
      %v358 = vand.u32 %v356, 7
      %v359 = vsub.s32 0, %v358
      %v360 = vsel %vm354, %v359, %v358
      %vm361 = vcmp.lt.s32.totalorder %v289, 0
      %v362 = vsub.s32 0, %v289
      %v363 = vsel %vm361, %v362, %v289
      %v364 = vshrl.u32 %v363, 3
      %v365 = vand.u32 %v363, 7
      %v366 = vsub.s32 0, %v365
      %v367 = vsel %vm361, %v366, %v365
      %vm368 = vcmp.lt.s32.totalorder %v290, 0
      %v369 = vsub.s32 0, %v290
      %v370 = vsel %vm368, %v369, %v290
      %v371 = vshrl.u32 %v370, 3
      %v372 = vand.u32 %v370, 7
      %v373 = vsub.s32 0, %v372
      %v374 = vsel %vm368, %v373, %v372
      %vm375 = vcmp.lt.s32.totalorder %v291, 0
      %v376 = vsub.s32 0, %v291
      %v377 = vsel %vm375, %v376, %v291
      %v378 = vshrl.u32 %v377, 3
      %v379 = vand.u32 %v377, 7
      %v380 = vsub.s32 0, %v379
      %v381 = vsel %vm375, %v380, %v379
      %vm382 = vcmp.lt.s32.totalorder %v292, 0
      %v383 = vsub.s32 0, %v292
      %v384 = vsel %vm382, %v383, %v292
      %v385 = vshrl.u32 %v384, 3
      %v386 = vand.u32 %v384, 7
      %v387 = vsub.s32 0, %v386
      %v388 = vsel %vm382, %v387, %v386
      %vm389 = vcmp.lt.s32.totalorder %v293, 0
      %v390 = vsub.s32 0, %v293
      %v391 = vsel %vm389, %v390, %v293
      %v392 = vshrl.u32 %v391, 3
      %v393 = vand.u32 %v391, 7
      %v394 = vsub.s32 0, %v393
      %v395 = vsel %vm389, %v394, %v393
      %vm396 = vcmp.lt.s32.totalorder %v294, 0
      %v397 = vsub.s32 0, %v294
      %v398 = vsel %vm396, %v397, %v294
      %v399 = vshrl.u32 %v398, 3
      %v400 = vand.u32 %v398, 7
      %v401 = vsub.s32 0, %v400
      %v402 = vsel %vm396, %v401, %v400
      %vm403 = vcmp.lt.s32.totalorder %v295, 0
      %v404 = vsub.s32 0, %v295
      %v405 = vsel %vm403, %v404, %v295
      %v406 = vshrl.u32 %v405, 3
      %v407 = vand.u32 %v405, 7
      %v408 = vsub.s32 0, %v407
      %v409 = vsel %vm403, %v408, %v407
      %vm410 = vcmp.ne.s32.totalorder %v304, 0
      %vm411 = vcmp.ne.s32.totalorder %v311, 0
      %vm412 = vcmp.ne.s32.totalorder %v318, 0
      %vm413 = vcmp.ne.s32.totalorder %v325, 0
      %vm414 = vcmp.ne.s32.totalorder %v332, 0
      %vm415 = vcmp.ne.s32.totalorder %v339, 0
      %vm416 = vcmp.ne.s32.totalorder %v346, 0
      %vm417 = vcmp.ne.s32.totalorder %v353, 0
      %vm418 = vcmp.ne.s32.totalorder %v360, 0
      %vm419 = vcmp.ne.s32.totalorder %v367, 0
      %vm420 = vcmp.ne.s32.totalorder %v374, 0
      %vm421 = vcmp.ne.s32.totalorder %v381, 0
      %vm422 = vcmp.ne.s32.totalorder %v388, 0
      %vm423 = vcmp.ne.s32.totalorder %v395, 0
      %vm424 = vcmp.ne.s32.totalorder %v402, 0
      %vm425 = vcmp.ne.s32.totalorder %v409, 0
      %vm426 = vcmp.lt.s32.totalorder %v304, 0
      %vm427 = vcmp.lt.s32.totalorder %v311, 0
      %vm428 = vcmp.lt.s32.totalorder %v318, 0
      %vm429 = vcmp.lt.s32.totalorder %v325, 0
      %vm430 = vcmp.lt.s32.totalorder %v332, 0
      %vm431 = vcmp.lt.s32.totalorder %v339, 0
      %vm432 = vcmp.lt.s32.totalorder %v346, 0
      %vm433 = vcmp.lt.s32.totalorder %v353, 0
      %vm434 = vcmp.lt.s32.totalorder %v360, 0
      %vm435 = vcmp.lt.s32.totalorder %v367, 0
      %vm436 = vcmp.lt.s32.totalorder %v374, 0
      %vm437 = vcmp.lt.s32.totalorder %v381, 0
      %vm438 = vcmp.lt.s32.totalorder %v388, 0
      %vm439 = vcmp.lt.s32.totalorder %v395, 0
      %vm440 = vcmp.lt.s32.totalorder %v402, 0
      %vm441 = vcmp.lt.s32.totalorder %v409, 0
      %vm442 = vmand %vm426, %vm410
      %vm443 = vmand %vm427, %vm411
      %vm444 = vmand %vm428, %vm412
      %vm445 = vmand %vm429, %vm413
      %vm446 = vmand %vm430, %vm414
      %vm447 = vmand %vm431, %vm415
      %vm448 = vmand %vm432, %vm416
      %vm449 = vmand %vm433, %vm417
      %vm450 = vmand %vm434, %vm418
      %vm451 = vmand %vm435, %vm419
      %vm452 = vmand %vm436, %vm420
      %vm453 = vmand %vm437, %vm421
      %vm454 = vmand %vm438, %vm422
      %vm455 = vmand %vm439, %vm423
      %vm456 = vmand %vm440, %vm424
      %vm457 = vmand %vm441, %vm425
      %v458 = vadd.s32 %v304, 8
      %v459 = vadd.s32 %v311, 8
      %v460 = vadd.s32 %v318, 8
      %v461 = vadd.s32 %v325, 8
      %v462 = vadd.s32 %v332, 8
      %v463 = vadd.s32 %v339, 8
      %v464 = vadd.s32 %v346, 8
      %v465 = vadd.s32 %v353, 8
      %v466 = vadd.s32 %v360, 8
      %v467 = vadd.s32 %v367, 8
      %v468 = vadd.s32 %v374, 8
      %v469 = vadd.s32 %v381, 8
      %v470 = vadd.s32 %v388, 8
      %v471 = vadd.s32 %v395, 8
      %v472 = vadd.s32 %v402, 8
      %v473 = vadd.s32 %v409, 8
      %v474 = vsel %vm442, %v458, %v304
      %v475 = vsel %vm443, %v459, %v311
      %v476 = vsel %vm444, %v460, %v318
      %v477 = vsel %vm445, %v461, %v325
      %v478 = vsel %vm446, %v462, %v332
      %v479 = vsel %vm447, %v463, %v339
      %v480 = vsel %vm448, %v464, %v346
      %v481 = vsel %vm449, %v465, %v353
      %v482 = vsel %vm450, %v466, %v360
      %v483 = vsel %vm451, %v467, %v367
      %v484 = vsel %vm452, %v468, %v374
      %v485 = vsel %vm453, %v469, %v381
      %v486 = vsel %vm454, %v470, %v388
      %v487 = vsel %vm455, %v471, %v395
      %v488 = vsel %vm456, %v472, %v402
      %v489 = vsel %vm457, %v473, %v409
      %vm490 = vcmp.lt.s32.totalorder %v297, 0
      %v491 = vsub.s32 0, %v297
      %v492 = vsel %vm490, %v491, %v297
      %v493 = vshrl.u32 %v492, 3
      %v494 = vand.u32 %v492, 7
      %v495 = vsub.s32 0, %v494
      %v496 = vsel %vm490, %v495, %v494
      %vm497 = vcmp.ne.s32.totalorder %v496, 0
      %vm498 = vcmp.lt.s32.totalorder %v496, 0
      %vm499 = vmand %vm498, %vm497
      %v500 = vadd.s32 %v496, 8
      %v501 = vsel %vm499, %v500, %v496
      %vm502 = vcmp.eq.s32.totalorder %v474, %v501
      %vm503 = vcmp.eq.s32.totalorder %v475, %v501
      %vm504 = vcmp.eq.s32.totalorder %v476, %v501
      %vm505 = vcmp.eq.s32.totalorder %v477, %v501
      %vm506 = vcmp.eq.s32.totalorder %v478, %v501
      %vm507 = vcmp.eq.s32.totalorder %v479, %v501
      %vm508 = vcmp.eq.s32.totalorder %v480, %v501
      %vm509 = vcmp.eq.s32.totalorder %v481, %v501
      %vm510 = vcmp.eq.s32.totalorder %v482, %v501
      %vm511 = vcmp.eq.s32.totalorder %v483, %v501
      %vm512 = vcmp.eq.s32.totalorder %v484, %v501
      %vm513 = vcmp.eq.s32.totalorder %v485, %v501
      %vm514 = vcmp.eq.s32.totalorder %v486, %v501
      %vm515 = vcmp.eq.s32.totalorder %v487, %v501
      %vm516 = vcmp.eq.s32.totalorder %v488, %v501
      %vm517 = vcmp.eq.s32.totalorder %v489, %v501
      %v518 = vsel %vm502, 1, 0
      %v519 = vsel %vm503, 1, 0
      %v520 = vsel %vm504, 1, 0
      %v521 = vsel %vm505, 1, 0
      %v522 = vsel %vm506, 1, 0
      %v523 = vsel %vm507, 1, 0
      %v524 = vsel %vm508, 1, 0
      %v525 = vsel %vm509, 1, 0
      %v526 = vsel %vm510, 1, 0
      %v527 = vsel %vm511, 1, 0
      %v528 = vsel %vm512, 1, 0
      %v529 = vsel %vm513, 1, 0
      %v530 = vsel %vm514, 1, 0
      %v531 = vsel %vm515, 1, 0
      %v532 = vsel %vm516, 1, 0
      %v533 = vsel %vm517, 1, 0
      %v534 = vcvt.s32.f32 %v518
      %v535 = vcvt.s32.f32 %v519
      %v536 = vcvt.s32.f32 %v520
      %v537 = vcvt.s32.f32 %v521
      %v538 = vcvt.s32.f32 %v522
      %v539 = vcvt.s32.f32 %v523
      %v540 = vcvt.s32.f32 %v524
      %v541 = vcvt.s32.f32 %v525
      %v542 = vcvt.s32.f32 %v526
      %v543 = vcvt.s32.f32 %v527
      %v544 = vcvt.s32.f32 %v528
      %v545 = vcvt.s32.f32 %v529
      %v546 = vcvt.s32.f32 %v530
      %v547 = vcvt.s32.f32 %v531
      %v548 = vcvt.s32.f32 %v532
      %v549 = vcvt.s32.f32 %v533
      %vm550 = vcmask 588800
      %551 = vst.msk [vmem:[#allocation2] sm:$0xff] %vm550, 0.0
      %552 = vst.msk [vmem:[#allocation2 + $0x8] sm:$0xff] %vm550, 0.0
      %vm553 = vcmask 582656
      %554 = vst.msk [vmem:[#allocation2 + $0x10] sm:$0x3] %vm553, 0.0
      %v555 = vld [vmem:[%s273] sm:$0xff]
      %v556 = vld [vmem:[%s273 + $0x8] sm:$0xff]
      %559 = vrot.lane.b32.xlu0 %v555, 4
      %v560 = vpop.permute.xlu0 %559
      %561 = vrot.lane.b32.xlu0 %v556, 4
      %v562 = vpop.permute.xlu0 %561
      %vm565 = vcmask 556064
      %566 = vst.msk [vmem:[#allocation2 + $0x1] sm:$0xff] %vm565, %v560
      %567 = vst.msk [vmem:[#allocation2 + $0x9] sm:$0xff] %vm565, %v562
      %v568 = vld [vmem:[%s2] sm:$0x1]
      %v569 = vld [vmem:[%s3] sm:$0x1]
      %v570 = vld [vmem:[#allocation2] sm:$0xff]
      %v571 = vld [vmem:[#allocation2 + $0x8] sm:$0xff]
      %v572 = vld [vmem:[#allocation2 + $0x10] sm:$0x3]
      %v573 = vld [vmem:[%s1] sm:$0xff]
      %v574 = vld [vmem:[%s1 + $0x8] sm:$0xff]
      %v575 = vld [vmem:[%s1 + $0x10] sm:$0xff]
      %v576 = vld [vmem:[%s1 + $0x18] sm:$0xff]
      %v577 = vld [vmem:[%s1 + $0x20] sm:$0xff]
      %v578 = vld [vmem:[%s1 + $0x28] sm:$0xff]
      %v579 = vld [vmem:[%s1 + $0x30] sm:$0xff]
      %v580 = vld [vmem:[%s1 + $0x38] sm:$0xff]
      %v581 = vld [vmem:[%s1 + $0x40] sm:$0xff]
      %s582 = scalar_lea.vmem %s1, 72
      %v583 = vld [vmem:[%s582] sm:$0xff]
      %v584 = vld [vmem:[%s582 + $0x8] sm:$0xff]
      %v585 = vld [vmem:[%s582 + $0x10] sm:$0xff]
      %v586 = vld [vmem:[%s582 + $0x18] sm:$0xff]
      %v587 = vld [vmem:[%s582 + $0x20] sm:$0xff]
      %v588 = vld [vmem:[%s582 + $0x28] sm:$0xff]
      %v589 = vld [vmem:[%s582 + $0x30] sm:$0xff]
      %v590 = vld [vmem:[%s582 + $0x38] sm:$0xff]
      %v591 = vld [vmem:[%s582 + $0x40] sm:$0xff]
      %vm595 = vcmask 1046528
      %v596 = vrot.slane %v570, 1
      %v597 = vrot.slane %v571, 1
      %v598 = vsel %vm595, %v596, %v597
      %v599 = vrot.slane %v572, 1
      %v600 = vsel %vm595, %v597, %v599
      %v601 = vsel %vm550, %v598, 0
      %v603 = vsel %vm550, %v600, 0
      %605 = vmatprep.subr.mxu0 0.0
      %606 = vmatpush1.msra.mxu0 %v583
      %607 = vmatprep.subr.mxu0 0.0
      %608 = vmatpush1.msra.mxu0 %v584
      %609 = vmatprep.subr.mxu0 0.0
      %610 = vmatpush1.msra.mxu0 %v585
      %611 = vmatprep.subr.mxu0 0.0
      %612 = vmatpush1.msra.mxu0 %v586
      %613 = vmatprep.subr.mxu0 0.0
      %614 = vmatpush1.msra.mxu0 %v587
      %615 = vmatprep.subr.mxu0 0.0
      %616 = vmatpush1.msra.mxu0 %v588
      %617 = vmatprep.subr.mxu0 0.0
      %618 = vmatpush1.msra.mxu0 %v589
      %619 = vmatprep.subr.mxu0 0.0
      %620 = vmatpush1.msra.mxu0 %v590
      %621 = vmatprep.subr.mxu0 0.0
      %622 = vmatpush1.msra.mxu0 %v591
      %623 = vmatprep.subr.mxu0 0.0
      %624 = vmatpush1.msra.mxu0 0.0
      %625 = vmatprep.subr.mxu0 0.0
      %626 = vmatpush1.msra.mxu0 0.0
      %627 = vmatprep.subr.mxu0 0.0
      %628 = vmatpush1.msra.mxu0 0.0
      %629 = vmatprep.subr.mxu0 0.0
      %630 = vmatpush1.msra.mxu0 0.0
      %631 = vmatprep.subr.mxu0 0.0
      %632 = vmatpush1.msra.mxu0 0.0
      %633 = vmatprep.subr.mxu0 0.0
      %634 = vmatpush1.msra.mxu0 0.0
      %635 = vmatprep.subr.mxu0 0.0
      %636 = vmatpush1.msra.mxu0 0.0
      %637 = vmatprep.subr.mxu0 0.0
      %638 = vmatpush1.msra.mxu0 0.0
      %639 = vmatprep.subr.mxu0 0.0
      %640 = vmatpush1.msra.mxu0 0.0
      %641 = vmatprep.subr.mxu0 0.0
      %642 = vmatpush1.msra.mxu0 0.0
      %643 = vmatprep.subr.mxu0 0.0
      %644 = vmatpush1.msra.mxu0 0.0
      %645 = vmatprep.subr.mxu0 0.0
      %646 = vmatpush1.msra.mxu0 0.0
      %647 = vmatprep.subr.mxu0 0.0
      %648 = vmatpush1.msra.mxu0 0.0
      %649 = vmatprep.subr.mxu0 0.0
      %650 = vmatpush1.msra.mxu0 0.0
      %651 = vmatprep.subr.mxu0 0.0
      %652 = vmatpush1.msra.mxu0 0.0
      %653 = vmatprep.subr.mxu0 0.0
      %654 = vmatpush1.msra.mxu0 0.0
      %655 = vmatprep.subr.mxu0 0.0
      %656 = vmatpush1.msra.mxu0 0.0
      %657 = vmatprep.subr.mxu0 0.0
      %658 = vmatpush1.msra.mxu0 0.0
      %659 = vmatprep.subr.mxu0 0.0
      %660 = vmatpush1.msra.mxu0 0.0
      %661 = vmatprep.subr.mxu0 0.0
      %662 = vmatpush1.msra.mxu0 0.0
      %663 = vmatprep.subr.mxu0 0.0
      %664 = vmatpush1.msra.mxu0 0.0
      %665 = vmatprep.subr.mxu0 0.0
      %666 = vmatpush1.msra.mxu0 0.0
      %667 = vmatprep.subr.mxu0 0.0
      %668 = vmatpush1.msra.mxu0 0.0
      %669 = vmatprep.mubr.f32.mxu0 0.0
      %670 = vmatmul.mubr.f32.gmra.mrb[0].mxu0 %v601
      %v671 = vpop.f32.mrb[0].mxu0
      %v672 = vadd.f32 0.0, %v671
      %v673 = vpop.f32.mrb[0].mxu0
      %674 = vmatprep.mubr.f32.mxu0 0.0
      %675 = vmatmul.mubr.f32.gmra.mrb[0].mxu0 %v603
      %v676 = vpop.f32.mrb[0].mxu0
      %v677 = vadd.f32 0.0, %v676
      %v678 = vpop.f32.mrb[0].mxu0
      %679 = vdwg.mxu0
      %v680 = vsel %vm550, %v570, 0
      %v682 = vsel %vm550, %v571, 0
      %684 = vmatprep.subr.mxu0 0.0
      %685 = vmatpush1.msra.mxu0 %v573
      %686 = vmatprep.subr.mxu0 0.0
      %687 = vmatpush1.msra.mxu0 %v574
      %688 = vmatprep.subr.mxu0 0.0
      %689 = vmatpush1.msra.mxu0 %v575
      %690 = vmatprep.subr.mxu0 0.0
      %691 = vmatpush1.msra.mxu0 %v576
      %692 = vmatprep.subr.mxu0 0.0
      %693 = vmatpush1.msra.mxu0 %v577
      %694 = vmatprep.subr.mxu0 0.0
      %695 = vmatpush1.msra.mxu0 %v578
      %696 = vmatprep.subr.mxu0 0.0
      %697 = vmatpush1.msra.mxu0 %v579
      %698 = vmatprep.subr.mxu0 0.0
      %699 = vmatpush1.msra.mxu0 %v580
      %700 = vmatprep.subr.mxu0 0.0
      %701 = vmatpush1.msra.mxu0 %v581
      %702 = vmatprep.subr.mxu0 0.0
      %703 = vmatpush1.msra.mxu0 0.0
      %704 = vmatprep.subr.mxu0 0.0
      %705 = vmatpush1.msra.mxu0 0.0
      %706 = vmatprep.subr.mxu0 0.0
      %707 = vmatpush1.msra.mxu0 0.0
      %708 = vmatprep.subr.mxu0 0.0
      %709 = vmatpush1.msra.mxu0 0.0
      %710 = vmatprep.subr.mxu0 0.0
      %711 = vmatpush1.msra.mxu0 0.0
      %712 = vmatprep.subr.mxu0 0.0
      %713 = vmatpush1.msra.mxu0 0.0
      %714 = vmatprep.subr.mxu0 0.0
      %715 = vmatpush1.msra.mxu0 0.0
      %716 = vmatprep.subr.mxu0 0.0
      %717 = vmatpush1.msra.mxu0 0.0
      %718 = vmatprep.subr.mxu0 0.0
      %719 = vmatpush1.msra.mxu0 0.0
      %720 = vmatprep.subr.mxu0 0.0
      %721 = vmatpush1.msra.mxu0 0.0
      %722 = vmatprep.subr.mxu0 0.0
      %723 = vmatpush1.msra.mxu0 0.0
      %724 = vmatprep.subr.mxu0 0.0
      %725 = vmatpush1.msra.mxu0 0.0
      %726 = vmatprep.subr.mxu0 0.0
      %727 = vmatpush1.msra.mxu0 0.0
      %728 = vmatprep.subr.mxu0 0.0
      %729 = vmatpush1.msra.mxu0 0.0
      %730 = vmatprep.subr.mxu0 0.0
      %731 = vmatpush1.msra.mxu0 0.0
      %732 = vmatprep.subr.mxu0 0.0
      %733 = vmatpush1.msra.mxu0 0.0
      %734 = vmatprep.subr.mxu0 0.0
      %735 = vmatpush1.msra.mxu0 0.0
      %736 = vmatprep.subr.mxu0 0.0
      %737 = vmatpush1.msra.mxu0 0.0
      %738 = vmatprep.subr.mxu0 0.0
      %739 = vmatpush1.msra.mxu0 0.0
      %740 = vmatprep.subr.mxu0 0.0
      %741 = vmatpush1.msra.mxu0 0.0
      %742 = vmatprep.subr.mxu0 0.0
      %743 = vmatpush1.msra.mxu0 0.0
      %744 = vmatprep.subr.mxu0 0.0
      %745 = vmatpush1.msra.mxu0 0.0
      %746 = vmatprep.subr.mxu0 0.0
      %747 = vmatpush1.msra.mxu0 0.0
      %748 = vmatprep.mubr.f32.mxu0 0.0
      %749 = vmatmul.mubr.f32.gmra.mrb[0].mxu0 %v680
      %v750 = vpop.f32.mrb[0].mxu0
      %v751 = vadd.f32 %v672, %v750
      %v752 = vpop.f32.mrb[0].mxu0
      %753 = vmatprep.mubr.f32.mxu0 0.0
      %754 = vmatmul.mubr.f32.gmra.mrb[0].mxu0 %v682
      %v755 = vpop.f32.mrb[0].mxu0
      %v756 = vadd.f32 %v677, %v755
      %v757 = vpop.f32.mrb[0].mxu0
      %758 = vdwg.mxu0
      %s759 = scalar_lea.vmem %s1, 144
      %v760 = vld [vmem:[%s759] sm:$0xff]
      %v761 = vld [vmem:[%s759 + $0x8] sm:$0xff]
      %v762 = vld [vmem:[%s759 + $0x10] sm:$0xff]
      %v763 = vld [vmem:[%s759 + $0x18] sm:$0xff]
      %v764 = vld [vmem:[%s759 + $0x20] sm:$0xff]
      %v765 = vld [vmem:[%s759 + $0x28] sm:$0xff]
      %v766 = vld [vmem:[%s759 + $0x30] sm:$0xff]
      %v767 = vld [vmem:[%s759 + $0x38] sm:$0xff]
      %v768 = vld [vmem:[%s759 + $0x40] sm:$0xff]
      %vm769 = vcmask 1045504
      %v770 = vrot.slane %v570, 2
      %v771 = vrot.slane %v571, 2
      %v772 = vsel %vm769, %v770, %v771
      %v773 = vrot.slane %v572, 2
      %v774 = vsel %vm769, %v771, %v773
      %v775 = vsel %vm550, %v772, 0
      %v777 = vsel %vm550, %v774, 0
      %779 = vmatprep.subr.mxu0 0.0
      %780 = vmatpush1.msra.mxu0 %v760
      %781 = vmatprep.subr.mxu0 0.0
      %782 = vmatpush1.msra.mxu0 %v761
      %783 = vmatprep.subr.mxu0 0.0
      %784 = vmatpush1.msra.mxu0 %v762
      %785 = vmatprep.subr.mxu0 0.0
      %786 = vmatpush1.msra.mxu0 %v763
      %787 = vmatprep.subr.mxu0 0.0
      %788 = vmatpush1.msra.mxu0 %v764
      %789 = vmatprep.subr.mxu0 0.0
      %790 = vmatpush1.msra.mxu0 %v765
      %791 = vmatprep.subr.mxu0 0.0
      %792 = vmatpush1.msra.mxu0 %v766
      %793 = vmatprep.subr.mxu0 0.0
      %794 = vmatpush1.msra.mxu0 %v767
      %795 = vmatprep.subr.mxu0 0.0
      %796 = vmatpush1.msra.mxu0 %v768
      %797 = vmatprep.subr.mxu0 0.0
      %798 = vmatpush1.msra.mxu0 0.0
      %799 = vmatprep.subr.mxu0 0.0
      %800 = vmatpush1.msra.mxu0 0.0
      %801 = vmatprep.subr.mxu0 0.0
      %802 = vmatpush1.msra.mxu0 0.0
      %803 = vmatprep.subr.mxu0 0.0
      %804 = vmatpush1.msra.mxu0 0.0
      %805 = vmatprep.subr.mxu0 0.0
      %806 = vmatpush1.msra.mxu0 0.0
      %807 = vmatprep.subr.mxu0 0.0
      %808 = vmatpush1.msra.mxu0 0.0
      %809 = vmatprep.subr.mxu0 0.0
      %810 = vmatpush1.msra.mxu0 0.0
      %811 = vmatprep.subr.mxu0 0.0
      %812 = vmatpush1.msra.mxu0 0.0
      %813 = vmatprep.subr.mxu0 0.0
      %814 = vmatpush1.msra.mxu0 0.0
      %815 = vmatprep.subr.mxu0 0.0
      %816 = vmatpush1.msra.mxu0 0.0
      %817 = vmatprep.subr.mxu0 0.0
      %818 = vmatpush1.msra.mxu0 0.0
      %819 = vmatprep.subr.mxu0 0.0
      %820 = vmatpush1.msra.mxu0 0.0
      %821 = vmatprep.subr.mxu0 0.0
      %822 = vmatpush1.msra.mxu0 0.0
      %823 = vmatprep.subr.mxu0 0.0
      %824 = vmatpush1.msra.mxu0 0.0
      %825 = vmatprep.subr.mxu0 0.0
      %826 = vmatpush1.msra.mxu0 0.0
      %827 = vmatprep.subr.mxu0 0.0
      %828 = vmatpush1.msra.mxu0 0.0
      %829 = vmatprep.subr.mxu0 0.0
      %830 = vmatpush1.msra.mxu0 0.0
      %831 = vmatprep.subr.mxu0 0.0
      %832 = vmatpush1.msra.mxu0 0.0
      %833 = vmatprep.subr.mxu0 0.0
      %834 = vmatpush1.msra.mxu0 0.0
      %835 = vmatprep.subr.mxu0 0.0
      %836 = vmatpush1.msra.mxu0 0.0
      %837 = vmatprep.subr.mxu0 0.0
      %838 = vmatpush1.msra.mxu0 0.0
      %839 = vmatprep.subr.mxu0 0.0
      %840 = vmatpush1.msra.mxu0 0.0
      %841 = vmatprep.subr.mxu0 0.0
      %842 = vmatpush1.msra.mxu0 0.0
      %843 = vmatprep.mubr.f32.mxu0 0.0
      %844 = vmatmul.mubr.f32.gmra.mrb[0].mxu0 %v775
      %v845 = vpop.f32.mrb[0].mxu0
      %v846 = vadd.f32 0.0, %v845
      %v847 = vpop.f32.mrb[0].mxu0
      %848 = vmatprep.mubr.f32.mxu0 0.0
      %849 = vmatmul.mubr.f32.gmra.mrb[0].mxu0 %v777
      %v850 = vpop.f32.mrb[0].mxu0
      %v851 = vadd.f32 0.0, %v850
      %v852 = vpop.f32.mrb[0].mxu0
      %853 = vdwg.mxu0
      %v854 = vadd.f32 %v751, %v846
      %v855 = vadd.f32 %v756, %v851
      %856 = vmatprep.subr.mxu0 0.0
      %857 = vmatpush1.msra.mxu0 %v534
      %858 = vmatprep.subr.mxu0 0.0
      %859 = vmatpush1.msra.mxu0 %v535
      %860 = vmatprep.subr.mxu0 0.0
      %861 = vmatpush1.msra.mxu0 %v536
      %862 = vmatprep.subr.mxu0 0.0
      %863 = vmatpush1.msra.mxu0 %v537
      %864 = vmatprep.subr.mxu0 0.0
      %865 = vmatpush1.msra.mxu0 %v538
      %866 = vmatprep.subr.mxu0 0.0
      %867 = vmatpush1.msra.mxu0 %v539
      %868 = vmatprep.subr.mxu0 0.0
      %869 = vmatpush1.msra.mxu0 %v540
      %870 = vmatprep.subr.mxu0 0.0
      %871 = vmatpush1.msra.mxu0 %v541
      %872 = vmatprep.subr.mxu0 0.0
      %873 = vmatpush1.msra.mxu0 %v542
      %874 = vmatprep.subr.mxu0 0.0
      %875 = vmatpush1.msra.mxu0 %v543
      %876 = vmatprep.subr.mxu0 0.0
      %877 = vmatpush1.msra.mxu0 %v544
      %878 = vmatprep.subr.mxu0 0.0
      %879 = vmatpush1.msra.mxu0 %v545
      %880 = vmatprep.subr.mxu0 0.0
      %881 = vmatpush1.msra.mxu0 %v546
      %882 = vmatprep.subr.mxu0 0.0
      %883 = vmatpush1.msra.mxu0 %v547
      %884 = vmatprep.subr.mxu0 0.0
      %885 = vmatpush1.msra.mxu0 %v548
      %886 = vmatprep.subr.mxu0 0.0
      %887 = vmatpush1.msra.mxu0 %v549
      %888 = vmatprep.subr.mxu0 0.0
      %889 = vmatpush1.msra.mxu0 0.0
      %890 = vmatprep.subr.mxu0 0.0
      %891 = vmatpush1.msra.mxu0 0.0
      %892 = vmatprep.subr.mxu0 0.0
      %893 = vmatpush1.msra.mxu0 0.0
      %894 = vmatprep.subr.mxu0 0.0
      %895 = vmatpush1.msra.mxu0 0.0
      %896 = vmatprep.subr.mxu0 0.0
      %897 = vmatpush1.msra.mxu0 0.0
      %898 = vmatprep.subr.mxu0 0.0
      %899 = vmatpush1.msra.mxu0 0.0
      %900 = vmatprep.subr.mxu0 0.0
      %901 = vmatpush1.msra.mxu0 0.0
      %902 = vmatprep.subr.mxu0 0.0
      %903 = vmatpush1.msra.mxu0 0.0
      %904 = vmatprep.subr.mxu0 0.0
      %905 = vmatpush1.msra.mxu0 0.0
      %906 = vmatprep.subr.mxu0 0.0
      %907 = vmatpush1.msra.mxu0 0.0
      %908 = vmatprep.subr.mxu0 0.0
      %909 = vmatpush1.msra.mxu0 0.0
      %910 = vmatprep.subr.mxu0 0.0
      %911 = vmatpush1.msra.mxu0 0.0
      %912 = vmatprep.subr.mxu0 0.0
      %913 = vmatpush1.msra.mxu0 0.0
      %914 = vmatprep.subr.mxu0 0.0
      %915 = vmatpush1.msra.mxu0 0.0
      %916 = vmatprep.subr.mxu0 0.0
      %917 = vmatpush1.msra.mxu0 0.0
      %918 = vmatprep.subr.mxu0 0.0
      %919 = vmatpush1.msra.mxu0 0.0
      %920 = vmatprep.mubr.f32.mxu0 0.0
      %921 = vmatmul.mubr.f32.gmra.mrb[0].mxu0 %v854
      %v922 = vpop.f32.mrb[0].mxu0
      %v923 = vadd.f32 0.0, %v922
      %v924 = vpop.f32.mrb[0].mxu0
      %925 = vmatprep.mubr.f32.mxu0 0.0
      %926 = vmatmul.mubr.f32.gmra.mrb[0].mxu0 %v855
      %v927 = vpop.f32.mrb[0].mxu0
      %v928 = vadd.f32 0.0, %v927
      %v929 = vpop.f32.mrb[0].mxu0
      %930 = vdwg.mxu0
      %v931 = vadd.f32 %v923, %v928
      %v932 = vrot.slane %v931, 4
      %v933 = vadd.f32 %v931, %v932
      %v934 = vrot.slane %v933, 2
      %v935 = vadd.f32 %v933, %v934
      %v936 = vrot.slane %v935, 1
      %v937 = vadd.f32 %v935, %v936
      %v938 = vmul.f32 %v854, %v854
      %v939 = vmul.f32 %v855, %v855
      %940 = vmatprep.subr.mxu0 0.0
      %941 = vmatpush1.msra.mxu0 %v534
      %942 = vmatprep.subr.mxu0 0.0
      %943 = vmatpush1.msra.mxu0 %v535
      %944 = vmatprep.subr.mxu0 0.0
      %945 = vmatpush1.msra.mxu0 %v536
      %946 = vmatprep.subr.mxu0 0.0
      %947 = vmatpush1.msra.mxu0 %v537
      %948 = vmatprep.subr.mxu0 0.0
      %949 = vmatpush1.msra.mxu0 %v538
      %950 = vmatprep.subr.mxu0 0.0
      %951 = vmatpush1.msra.mxu0 %v539
      %952 = vmatprep.subr.mxu0 0.0
      %953 = vmatpush1.msra.mxu0 %v540
      %954 = vmatprep.subr.mxu0 0.0
      %955 = vmatpush1.msra.mxu0 %v541
      %956 = vmatprep.subr.mxu0 0.0
      %957 = vmatpush1.msra.mxu0 %v542
      %958 = vmatprep.subr.mxu0 0.0
      %959 = vmatpush1.msra.mxu0 %v543
      %960 = vmatprep.subr.mxu0 0.0
      %961 = vmatpush1.msra.mxu0 %v544
      %962 = vmatprep.subr.mxu0 0.0
      %963 = vmatpush1.msra.mxu0 %v545
      %964 = vmatprep.subr.mxu0 0.0
      %965 = vmatpush1.msra.mxu0 %v546
      %966 = vmatprep.subr.mxu0 0.0
      %967 = vmatpush1.msra.mxu0 %v547
      %968 = vmatprep.subr.mxu0 0.0
      %969 = vmatpush1.msra.mxu0 %v548
      %970 = vmatprep.subr.mxu0 0.0
      %971 = vmatpush1.msra.mxu0 %v549
      %972 = vmatprep.subr.mxu0 0.0
      %973 = vmatpush1.msra.mxu0 0.0
      %974 = vmatprep.subr.mxu0 0.0
      %975 = vmatpush1.msra.mxu0 0.0
      %976 = vmatprep.subr.mxu0 0.0
      %977 = vmatpush1.msra.mxu0 0.0
      %978 = vmatprep.subr.mxu0 0.0
      %979 = vmatpush1.msra.mxu0 0.0
      %980 = vmatprep.subr.mxu0 0.0
      %981 = vmatpush1.msra.mxu0 0.0
      %982 = vmatprep.subr.mxu0 0.0
      %983 = vmatpush1.msra.mxu0 0.0
      %984 = vmatprep.subr.mxu0 0.0
      %985 = vmatpush1.msra.mxu0 0.0
      %986 = vmatprep.subr.mxu0 0.0
      %987 = vmatpush1.msra.mxu0 0.0
      %988 = vmatprep.subr.mxu0 0.0
      %989 = vmatpush1.msra.mxu0 0.0
      %990 = vmatprep.subr.mxu0 0.0
      %991 = vmatpush1.msra.mxu0 0.0
      %992 = vmatprep.subr.mxu0 0.0
      %993 = vmatpush1.msra.mxu0 0.0
      %994 = vmatprep.subr.mxu0 0.0
      %995 = vmatpush1.msra.mxu0 0.0
      %996 = vmatprep.subr.mxu0 0.0
      %997 = vmatpush1.msra.mxu0 0.0
      %998 = vmatprep.subr.mxu0 0.0
      %999 = vmatpush1.msra.mxu0 0.0
      %1000 = vmatprep.subr.mxu0 0.0
      %1001 = vmatpush1.msra.mxu0 0.0
      %1002 = vmatprep.subr.mxu0 0.0
      %1003 = vmatpush1.msra.mxu0 0.0
      %1004 = vmatprep.mubr.f32.mxu0 0.0
      %1005 = vmatmul.mubr.f32.gmra.mrb[0].mxu0 %v938
      %v1006 = vpop.f32.mrb[0].mxu0
      %v1007 = vadd.f32 0.0, %v1006
      %v1008 = vpop.f32.mrb[0].mxu0
      %1009 = vmatprep.mubr.f32.mxu0 0.0
      %1010 = vmatmul.mubr.f32.gmra.mrb[0].mxu0 %v939
      %v1011 = vpop.f32.mrb[0].mxu0
      %v1012 = vadd.f32 0.0, %v1011
      %v1013 = vpop.f32.mrb[0].mxu0
      %1014 = vdwg.mxu0
      %v1015 = vadd.f32 %v1007, %v1012
      %v1016 = vrot.slane %v1015, 4
      %v1017 = vadd.f32 %v1015, %v1016
      %v1018 = vrot.slane %v1017, 2
      %v1019 = vadd.f32 %v1017, %v1018
      %v1020 = vrot.slane %v1019, 1
      %v1021 = vadd.f32 %v1019, %v1020
      %v1022 = vmul.f32 %v937, 0.00390625
      %v1023 = vmul.f32 %v1021, 0.00390625
      %v1024 = vmul.f32 %v1022, %v1022
      %v1025 = vsub.f32 %v1023, %v1024
      %v1026 = vadd.f32 %v1025, 1e-05
      %v1027 = vrsqrt.pop %v1026
      %v1028 = vmul.f32 %v568, %v1027
      %v1029 = vmul.f32 %v1022, %v1028
      %v1030 = vsub.f32 %v569, %v1029
      %v1032 = vlaneseq
      %v1033 = vshrl.u32 %v1032, 7
      %v1034 = vsub.s32 0, %v1033
      %v1035 = vrot.slane %v1028, %v1034
      %v1037 = vmul.f32 %v854, %v1035
      %v1038 = vmul.f32 %v855, %v1035
      %v1040 = vlaneseq
      %v1041 = vshrl.u32 %v1040, 7
      %v1042 = vsub.s32 0, %v1041
      %v1043 = vrot.slane %v1030, %v1042
      %v1045 = vadd.f32 %v1037, %v1043
      %v1046 = vadd.f32 %v1038, %v1043
      %vm1047 = vcmp.ge.f32.partialorder %v1045, 0.0
      %vm1048 = vcmp.ge.f32.partialorder %v1046, 0.0
      %v1049 = vmul.f32 %v1045, 0.01
      %v1050 = vmul.f32 %v1046, 0.01
      %v1051 = vsel %vm1047, %v1045, %v1049
      %v1052 = vsel %vm1048, %v1046, %v1050
      %1053 = vst [vmem:[#allocation3] sm:$0xff] 0.0
      %vm1054 = vcmask 130048
      %1055 = vst.msk [vmem:[#allocation3 + $0x8] sm:$0xff] %vm1054, 0.0
      %1056 = vst [vmem:[#allocation3 + $0x10] sm:$0xff] 0.0
      %1057 = vst.msk [vmem:[#allocation3 + $0x18] sm:$0xff] %vm1054, 0.0
      %1058 = vst [vmem:[#allocation3 + $0x20] sm:$0x3] 0.0
      %vm1059 = vcmask 123904
      %1060 = vst.msk [vmem:[#allocation3 + $0x28] sm:$0x3] %vm1059, 0.0
      %vm1063 = vcmask 1040384
      %v1064 = vrot.slane %v1051, 7
      %v1065 = vrot.slane %v1052, 7
      %v1066 = vsel %vm1063, %v1064, %v1065
      %1067 = vrot.lane.b32.xlu0 %v1064, 8
      %v1068 = vpop.permute.xlu0 %1067
      %1069 = vrot.lane.b32.xlu0 %v1066, 8
      %v1070 = vpop.permute.xlu0 %1069
      %1071 = vrot.lane.b32.xlu0 %v1065, 8
      %v1072 = vpop.permute.xlu0 %1071
      %vm1076 = vcmask 1047617
      %1077 = vst.msk [vmem:[#allocation3] sm:$0xfe] %vm1076, %v1068
      %vm1078 = vcmask 64513
      %1079 = vst.msk [vmem:[#allocation3 + $0x8] sm:$0xfe] %vm1078, %v1068
      %vm1080 = vcmask 1047616
      %1081 = vst.msk [vmem:[#allocation3 + $0x10] sm:$0xff] %vm1080, %v1070
      %vm1082 = vcmask 64512
      %1083 = vst.msk [vmem:[#allocation3 + $0x18] sm:$0xff] %vm1082, %v1070
      %vm1084 = vcmask 1040448
      %1085 = vst.msk [vmem:[#allocation3 + $0x20] sm:$0x1] %vm1084, %v1072
      %vm1086 = vcmask 57344
      %1087 = vst.msk [vmem:[#allocation3 + $0x28] sm:$0x1] %vm1086, %v1072
      %v1088 = vld [vmem:[%s5] sm:$0x1]
      %v1089 = vld [vmem:[%s6] sm:$0x1]
      %v1090 = vld [vmem:[#allocation3] sm:$0xff]
      %v1091 = vld [vmem:[#allocation3 + $0x8] sm:$0xff]
      %v1092 = vld [vmem:[#allocation3 + $0x10] sm:$0xff]
      %v1093 = vld [vmem:[#allocation3 + $0x18] sm:$0xff]
      %v1094 = vld [vmem:[#allocation3 + $0x20] sm:$0x3]
      %v1095 = vld [vmem:[#allocation3 + $0x28] sm:$0x3]
      %v1096 = vld [vmem:[%s4] sm:$0xff]
      %v1097 = vld [vmem:[%s4 + $0x8] sm:$0xff]
      %v1098 = vld [vmem:[%s4 + $0x10] sm:$0xff]
      %v1099 = vld [vmem:[%s4 + $0x18] sm:$0xff]
      %v1100 = vld [vmem:[%s4 + $0x20] sm:$0xff]
      %v1101 = vld [vmem:[%s4 + $0x28] sm:$0xff]
      %v1102 = vld [vmem:[%s4 + $0x30] sm:$0xff]
      %v1103 = vld [vmem:[%s4 + $0x38] sm:$0xff]
      %v1104 = vld [vmem:[%s4 + $0x40] sm:$0xff]
      %v1105 = vld [vmem:[%s4 + $0x48] sm:$0xff]
      %v1106 = vld [vmem:[%s4 + $0x50] sm:$0xff]
      %v1107 = vld [vmem:[%s4 + $0x58] sm:$0xff]
      %v1108 = vld [vmem:[%s4 + $0x60] sm:$0xff]
      %v1109 = vld [vmem:[%s4 + $0x68] sm:$0xff]
      %v1110 = vld [vmem:[%s4 + $0x70] sm:$0xff]
      %v1111 = vld [vmem:[%s4 + $0x78] sm:$0xff]
      %v1112 = vld [vmem:[%s4 + $0x80] sm:$0xff]
      %v1113 = vld [vmem:[%s4 + $0x88] sm:$0xff]
      %s1114 = scalar_lea.vmem %s4, 144
      %v1115 = vld [vmem:[%s1114] sm:$0xff]
      %v1116 = vld [vmem:[%s1114 + $0x8] sm:$0xff]
      %v1117 = vld [vmem:[%s1114 + $0x10] sm:$0xff]
      %v1118 = vld [vmem:[%s1114 + $0x18] sm:$0xff]
      %v1119 = vld [vmem:[%s1114 + $0x20] sm:$0xff]
      %v1120 = vld [vmem:[%s1114 + $0x28] sm:$0xff]
      %v1121 = vld [vmem:[%s1114 + $0x30] sm:$0xff]
      %v1122 = vld [vmem:[%s1114 + $0x38] sm:$0xff]
      %v1123 = vld [vmem:[%s1114 + $0x40] sm:$0xff]
      %v1124 = vld [vmem:[%s1114 + $0x48] sm:$0xff]
      %v1125 = vld [vmem:[%s1114 + $0x50] sm:$0xff]
      %v1126 = vld [vmem:[%s1114 + $0x58] sm:$0xff]
      %v1127 = vld [vmem:[%s1114 + $0x60] sm:$0xff]
      %v1128 = vld [vmem:[%s1114 + $0x68] sm:$0xff]
      %v1129 = vld [vmem:[%s1114 + $0x70] sm:$0xff]
      %v1130 = vld [vmem:[%s1114 + $0x78] sm:$0xff]
      %v1131 = vld [vmem:[%s1114 + $0x80] sm:$0xff]
      %v1132 = vld [vmem:[%s1114 + $0x88] sm:$0xff]
      %v1139 = vrot.slane %v1090, 1
      %v1140 = vrot.slane %v1092, 1
      %v1141 = vsel %vm595, %v1139, %v1140
      %v1142 = vrot.slane %v1091, 1
      %v1143 = vrot.slane %v1093, 1
      %v1144 = vsel %vm595, %v1142, %v1143
      %v1145 = vrot.slane %v1094, 1
      %v1146 = vsel %vm595, %v1140, %v1145
      %v1147 = vrot.slane %v1095, 1
      %v1148 = vsel %vm595, %v1143, %v1147
      %v1151 = vsel %vm1054, %v1144, 0
      %v1153 = vsel %vm1054, %v1148, 0
      %1155 = vmatprep.subr.mxu0 0.0
      %1156 = vmatpush1.msra.mxu0 %v1115
      %1157 = vmatprep.subr.mxu0 0.0
      %1158 = vmatpush1.msra.mxu0 %v1116
      %1159 = vmatprep.subr.mxu0 0.0
      %1160 = vmatpush1.msra.mxu0 %v1117
      %1161 = vmatprep.subr.mxu0 0.0
      %1162 = vmatpush1.msra.mxu0 %v1118
      %1163 = vmatprep.subr.mxu0 0.0
      %1164 = vmatpush1.msra.mxu0 %v1119
      %1165 = vmatprep.subr.mxu0 0.0
      %1166 = vmatpush1.msra.mxu0 %v1120
      %1167 = vmatprep.subr.mxu0 0.0
      %1168 = vmatpush1.msra.mxu0 %v1121
      %1169 = vmatprep.subr.mxu0 0.0
      %1170 = vmatpush1.msra.mxu0 %v1122
      %1171 = vmatprep.subr.mxu0 0.0
      %1172 = vmatpush1.msra.mxu0 %v1123
      %1173 = vmatprep.subr.mxu0 0.0
      %1174 = vmatpush1.msra.mxu0 %v1124
      %1175 = vmatprep.subr.mxu0 0.0
      %1176 = vmatpush1.msra.mxu0 %v1125
      %1177 = vmatprep.subr.mxu0 0.0
      %1178 = vmatpush1.msra.mxu0 %v1126
      %1179 = vmatprep.subr.mxu0 0.0
      %1180 = vmatpush1.msra.mxu0 %v1127
      %1181 = vmatprep.subr.mxu0 0.0
      %1182 = vmatpush1.msra.mxu0 %v1128
      %1183 = vmatprep.subr.mxu0 0.0
      %1184 = vmatpush1.msra.mxu0 %v1129
      %1185 = vmatprep.subr.mxu0 0.0
      %1186 = vmatpush1.msra.mxu0 %v1130
      %1187 = vmatprep.subr.mxu0 0.0
      %1188 = vmatpush1.msra.mxu0 %v1131
      %1189 = vmatprep.subr.mxu0 0.0
      %1190 = vmatpush1.msra.mxu0 %v1132
      %1191 = vmatprep.subr.mxu0 0.0
      %1192 = vmatpush1.msra.mxu0 0.0
      %1193 = vmatprep.subr.mxu0 0.0
      %1194 = vmatpush1.msra.mxu0 0.0
      %1195 = vmatprep.subr.mxu0 0.0
      %1196 = vmatpush1.msra.mxu0 0.0
      %1197 = vmatprep.subr.mxu0 0.0
      %1198 = vmatpush1.msra.mxu0 0.0
      %1199 = vmatprep.subr.mxu0 0.0
      %1200 = vmatpush1.msra.mxu0 0.0
      %1201 = vmatprep.subr.mxu0 0.0
      %1202 = vmatpush1.msra.mxu0 0.0
      %1203 = vmatprep.subr.mxu0 0.0
      %1204 = vmatpush1.msra.mxu0 0.0
      %1205 = vmatprep.subr.mxu0 0.0
      %1206 = vmatpush1.msra.mxu0 0.0
      %1207 = vmatprep.subr.mxu0 0.0
      %1208 = vmatpush1.msra.mxu0 0.0
      %1209 = vmatprep.subr.mxu0 0.0
      %1210 = vmatpush1.msra.mxu0 0.0
      %1211 = vmatprep.subr.mxu0 0.0
      %1212 = vmatpush1.msra.mxu0 0.0
      %1213 = vmatprep.subr.mxu0 0.0
      %1214 = vmatpush1.msra.mxu0 0.0
      %1215 = vmatprep.subr.mxu0 0.0
      %1216 = vmatpush1.msra.mxu0 0.0
      %1217 = vmatprep.subr.mxu0 0.0
      %1218 = vmatpush1.msra.mxu0 0.0
      %1219 = vmatprep.mubr.f32.mxu0 %v1151
      %1220 = vmatmul.mubr.f32.gmra.mrb[0].mxu0 %v1141
      %v1221 = vpop.f32.mrb[0].mxu0
      %v1222 = vadd.f32 0.0, %v1221
      %v1223 = vpop.f32.mrb[0].mxu0
      %1224 = vmatprep.mubr.f32.mxu0 %v1153
      %1225 = vmatmul.mubr.f32.gmra.mrb[0].mxu0 %v1146
      %v1226 = vpop.f32.mrb[0].mxu0
      %v1227 = vadd.f32 0.0, %v1226
      %v1228 = vpop.f32.mrb[0].mxu0
      %1229 = vdwg.mxu0
      %v1230 = vsel %vm1054, %v1091, 0
      %v1232 = vsel %vm1054, %v1093, 0
      %1234 = vmatprep.subr.mxu0 0.0
      %1235 = vmatpush1.msra.mxu0 %v1096
      %1236 = vmatprep.subr.mxu0 0.0
      %1237 = vmatpush1.msra.mxu0 %v1097
      %1238 = vmatprep.subr.mxu0 0.0
      %1239 = vmatpush1.msra.mxu0 %v1098
      %1240 = vmatprep.subr.mxu0 0.0
      %1241 = vmatpush1.msra.mxu0 %v1099
      %1242 = vmatprep.subr.mxu0 0.0
      %1243 = vmatpush1.msra.mxu0 %v1100
      %1244 = vmatprep.subr.mxu0 0.0
      %1245 = vmatpush1.msra.mxu0 %v1101
      %1246 = vmatprep.subr.mxu0 0.0
      %1247 = vmatpush1.msra.mxu0 %v1102
      %1248 = vmatprep.subr.mxu0 0.0
      %1249 = vmatpush1.msra.mxu0 %v1103
      %1250 = vmatprep.subr.mxu0 0.0
      %1251 = vmatpush1.msra.mxu0 %v1104
      %1252 = vmatprep.subr.mxu0 0.0
      %1253 = vmatpush1.msra.mxu0 %v1105
      %1254 = vmatprep.subr.mxu0 0.0
      %1255 = vmatpush1.msra.mxu0 %v1106
      %1256 = vmatprep.subr.mxu0 0.0
      %1257 = vmatpush1.msra.mxu0 %v1107
      %1258 = vmatprep.subr.mxu0 0.0
      %1259 = vmatpush1.msra.mxu0 %v1108
      %1260 = vmatprep.subr.mxu0 0.0
      %1261 = vmatpush1.msra.mxu0 %v1109
      %1262 = vmatprep.subr.mxu0 0.0
      %1263 = vmatpush1.msra.mxu0 %v1110
      %1264 = vmatprep.subr.mxu0 0.0
      %1265 = vmatpush1.msra.mxu0 %v1111
      %1266 = vmatprep.subr.mxu0 0.0
      %1267 = vmatpush1.msra.mxu0 %v1112
      %1268 = vmatprep.subr.mxu0 0.0
      %1269 = vmatpush1.msra.mxu0 %v1113
      %1270 = vmatprep.subr.mxu0 0.0
      %1271 = vmatpush1.msra.mxu0 0.0
      %1272 = vmatprep.subr.mxu0 0.0
      %1273 = vmatpush1.msra.mxu0 0.0
      %1274 = vmatprep.subr.mxu0 0.0
      %1275 = vmatpush1.msra.mxu0 0.0
      %1276 = vmatprep.subr.mxu0 0.0
      %1277 = vmatpush1.msra.mxu0 0.0
      %1278 = vmatprep.subr.mxu0 0.0
      %1279 = vmatpush1.msra.mxu0 0.0
      %1280 = vmatprep.subr.mxu0 0.0
      %1281 = vmatpush1.msra.mxu0 0.0
      %1282 = vmatprep.subr.mxu0 0.0
      %1283 = vmatpush1.msra.mxu0 0.0
      %1284 = vmatprep.subr.mxu0 0.0
      %1285 = vmatpush1.msra.mxu0 0.0
      %1286 = vmatprep.subr.mxu0 0.0
      %1287 = vmatpush1.msra.mxu0 0.0
      %1288 = vmatprep.subr.mxu0 0.0
      %1289 = vmatpush1.msra.mxu0 0.0
      %1290 = vmatprep.subr.mxu0 0.0
      %1291 = vmatpush1.msra.mxu0 0.0
      %1292 = vmatprep.subr.mxu0 0.0
      %1293 = vmatpush1.msra.mxu0 0.0
      %1294 = vmatprep.subr.mxu0 0.0
      %1295 = vmatpush1.msra.mxu0 0.0
      %1296 = vmatprep.subr.mxu0 0.0
      %1297 = vmatpush1.msra.mxu0 0.0
      %1298 = vmatprep.mubr.f32.mxu0 %v1230
      %1299 = vmatmul.mubr.f32.gmra.mrb[0].mxu0 %v1090
      %v1300 = vpop.f32.mrb[0].mxu0
      %v1301 = vadd.f32 %v1222, %v1300
      %v1302 = vpop.f32.mrb[0].mxu0
      %1303 = vmatprep.mubr.f32.mxu0 %v1232
      %1304 = vmatmul.mubr.f32.gmra.mrb[0].mxu0 %v1092
      %v1305 = vpop.f32.mrb[0].mxu0
      %v1306 = vadd.f32 %v1227, %v1305
      %v1307 = vpop.f32.mrb[0].mxu0
      %1308 = vdwg.mxu0
      %s1309 = scalar_lea.vmem %s4, 288
      %v1310 = vld [vmem:[%s1309] sm:$0xff]
      %v1311 = vld [vmem:[%s1309 + $0x8] sm:$0xff]
      %v1312 = vld [vmem:[%s1309 + $0x10] sm:$0xff]
      %v1313 = vld [vmem:[%s1309 + $0x18] sm:$0xff]
      %v1314 = vld [vmem:[%s1309 + $0x20] sm:$0xff]
      %v1315 = vld [vmem:[%s1309 + $0x28] sm:$0xff]
      %v1316 = vld [vmem:[%s1309 + $0x30] sm:$0xff]
      %v1317 = vld [vmem:[%s1309 + $0x38] sm:$0xff]
      %v1318 = vld [vmem:[%s1309 + $0x40] sm:$0xff]
      %v1319 = vld [vmem:[%s1309 + $0x48] sm:$0xff]
      %v1320 = vld [vmem:[%s1309 + $0x50] sm:$0xff]
      %v1321 = vld [vmem:[%s1309 + $0x58] sm:$0xff]
      %v1322 = vld [vmem:[%s1309 + $0x60] sm:$0xff]
      %v1323 = vld [vmem:[%s1309 + $0x68] sm:$0xff]
      %v1324 = vld [vmem:[%s1309 + $0x70] sm:$0xff]
      %v1325 = vld [vmem:[%s1309 + $0x78] sm:$0xff]
      %v1326 = vld [vmem:[%s1309 + $0x80] sm:$0xff]
      %v1327 = vld [vmem:[%s1309 + $0x88] sm:$0xff]
      %v1328 = vrot.slane %v1090, 2
      %v1329 = vrot.slane %v1092, 2
      %v1330 = vsel %vm769, %v1328, %v1329
      %v1331 = vrot.slane %v1091, 2
      %v1332 = vrot.slane %v1093, 2
      %v1333 = vsel %vm769, %v1331, %v1332
      %v1334 = vrot.slane %v1094, 2
      %v1335 = vsel %vm769, %v1329, %v1334
      %v1336 = vrot.slane %v1095, 2
      %v1337 = vsel %vm769, %v1332, %v1336
      %v1340 = vsel %vm1054, %v1333, 0
      %v1342 = vsel %vm1054, %v1337, 0
      %1344 = vmatprep.subr.mxu0 0.0
      %1345 = vmatpush1.msra.mxu0 %v1310
      %1346 = vmatprep.subr.mxu0 0.0
      %1347 = vmatpush1.msra.mxu0 %v1311
      %1348 = vmatprep.subr.mxu0 0.0
      %1349 = vmatpush1.msra.mxu0 %v1312
      %1350 = vmatprep.subr.mxu0 0.0
      %1351 = vmatpush1.msra.mxu0 %v1313
      %1352 = vmatprep.subr.mxu0 0.0
      %1353 = vmatpush1.msra.mxu0 %v1314
      %1354 = vmatprep.subr.mxu0 0.0
      %1355 = vmatpush1.msra.mxu0 %v1315
      %1356 = vmatprep.subr.mxu0 0.0
      %1357 = vmatpush1.msra.mxu0 %v1316
      %1358 = vmatprep.subr.mxu0 0.0
      %1359 = vmatpush1.msra.mxu0 %v1317
      %1360 = vmatprep.subr.mxu0 0.0
      %1361 = vmatpush1.msra.mxu0 %v1318
      %1362 = vmatprep.subr.mxu0 0.0
      %1363 = vmatpush1.msra.mxu0 %v1319
      %1364 = vmatprep.subr.mxu0 0.0
      %1365 = vmatpush1.msra.mxu0 %v1320
      %1366 = vmatprep.subr.mxu0 0.0
      %1367 = vmatpush1.msra.mxu0 %v1321
      %1368 = vmatprep.subr.mxu0 0.0
      %1369 = vmatpush1.msra.mxu0 %v1322
      %1370 = vmatprep.subr.mxu0 0.0
      %1371 = vmatpush1.msra.mxu0 %v1323
      %1372 = vmatprep.subr.mxu0 0.0
      %1373 = vmatpush1.msra.mxu0 %v1324
      %1374 = vmatprep.subr.mxu0 0.0
      %1375 = vmatpush1.msra.mxu0 %v1325
      %1376 = vmatprep.subr.mxu0 0.0
      %1377 = vmatpush1.msra.mxu0 %v1326
      %1378 = vmatprep.subr.mxu0 0.0
      %1379 = vmatpush1.msra.mxu0 %v1327
      %1380 = vmatprep.subr.mxu0 0.0
      %1381 = vmatpush1.msra.mxu0 0.0
      %1382 = vmatprep.subr.mxu0 0.0
      %1383 = vmatpush1.msra.mxu0 0.0
      %1384 = vmatprep.subr.mxu0 0.0
      %1385 = vmatpush1.msra.mxu0 0.0
      %1386 = vmatprep.subr.mxu0 0.0
      %1387 = vmatpush1.msra.mxu0 0.0
      %1388 = vmatprep.subr.mxu0 0.0
      %1389 = vmatpush1.msra.mxu0 0.0
      %1390 = vmatprep.subr.mxu0 0.0
      %1391 = vmatpush1.msra.mxu0 0.0
      %1392 = vmatprep.subr.mxu0 0.0
      %1393 = vmatpush1.msra.mxu0 0.0
      %1394 = vmatprep.subr.mxu0 0.0
      %1395 = vmatpush1.msra.mxu0 0.0
      %1396 = vmatprep.subr.mxu0 0.0
      %1397 = vmatpush1.msra.mxu0 0.0
      %1398 = vmatprep.subr.mxu0 0.0
      %1399 = vmatpush1.msra.mxu0 0.0
      %1400 = vmatprep.subr.mxu0 0.0
      %1401 = vmatpush1.msra.mxu0 0.0
      %1402 = vmatprep.subr.mxu0 0.0
      %1403 = vmatpush1.msra.mxu0 0.0
      %1404 = vmatprep.subr.mxu0 0.0
      %1405 = vmatpush1.msra.mxu0 0.0
      %1406 = vmatprep.subr.mxu0 0.0
      %1407 = vmatpush1.msra.mxu0 0.0
      %1408 = vmatprep.mubr.f32.mxu0 %v1340
      %1409 = vmatmul.mubr.f32.gmra.mrb[0].mxu0 %v1330
      %v1410 = vpop.f32.mrb[0].mxu0
      %v1411 = vadd.f32 0.0, %v1410
      %v1412 = vpop.f32.mrb[0].mxu0
      %1413 = vmatprep.mubr.f32.mxu0 %v1342
      %1414 = vmatmul.mubr.f32.gmra.mrb[0].mxu0 %v1335
      %v1415 = vpop.f32.mrb[0].mxu0
      %v1416 = vadd.f32 0.0, %v1415
      %v1417 = vpop.f32.mrb[0].mxu0
      %1418 = vdwg.mxu0
      %v1419 = vadd.f32 %v1301, %v1411
      %v1420 = vadd.f32 %v1306, %v1416
      %1421 = vmatprep.subr.mxu0 0.0
      %1422 = vmatpush1.msra.mxu0 %v534
      %1423 = vmatprep.subr.mxu0 0.0
      %1424 = vmatpush1.msra.mxu0 %v535
      %1425 = vmatprep.subr.mxu0 0.0
      %1426 = vmatpush1.msra.mxu0 %v536
      %1427 = vmatprep.subr.mxu0 0.0
      %1428 = vmatpush1.msra.mxu0 %v537
      %1429 = vmatprep.subr.mxu0 0.0
      %1430 = vmatpush1.msra.mxu0 %v538
      %1431 = vmatprep.subr.mxu0 0.0
      %1432 = vmatpush1.msra.mxu0 %v539
      %1433 = vmatprep.subr.mxu0 0.0
      %1434 = vmatpush1.msra.mxu0 %v540
      %1435 = vmatprep.subr.mxu0 0.0
      %1436 = vmatpush1.msra.mxu0 %v541
      %1437 = vmatprep.subr.mxu0 0.0
      %1438 = vmatpush1.msra.mxu0 %v542
      %1439 = vmatprep.subr.mxu0 0.0
      %1440 = vmatpush1.msra.mxu0 %v543
      %1441 = vmatprep.subr.mxu0 0.0
      %1442 = vmatpush1.msra.mxu0 %v544
      %1443 = vmatprep.subr.mxu0 0.0
      %1444 = vmatpush1.msra.mxu0 %v545
      %1445 = vmatprep.subr.mxu0 0.0
      %1446 = vmatpush1.msra.mxu0 %v546
      %1447 = vmatprep.subr.mxu0 0.0
      %1448 = vmatpush1.msra.mxu0 %v547
      %1449 = vmatprep.subr.mxu0 0.0
      %1450 = vmatpush1.msra.mxu0 %v548
      %1451 = vmatprep.subr.mxu0 0.0
      %1452 = vmatpush1.msra.mxu0 %v549
      %1453 = vmatprep.subr.mxu0 0.0
      %1454 = vmatpush1.msra.mxu0 0.0
      %1455 = vmatprep.subr.mxu0 0.0
      %1456 = vmatpush1.msra.mxu0 0.0
      %1457 = vmatprep.subr.mxu0 0.0
      %1458 = vmatpush1.msra.mxu0 0.0
      %1459 = vmatprep.subr.mxu0 0.0
      %1460 = vmatpush1.msra.mxu0 0.0
      %1461 = vmatprep.subr.mxu0 0.0
      %1462 = vmatpush1.msra.mxu0 0.0
      %1463 = vmatprep.subr.mxu0 0.0
      %1464 = vmatpush1.msra.mxu0 0.0
      %1465 = vmatprep.subr.mxu0 0.0
      %1466 = vmatpush1.msra.mxu0 0.0
      %1467 = vmatprep.subr.mxu0 0.0
      %1468 = vmatpush1.msra.mxu0 0.0
      %1469 = vmatprep.subr.mxu0 0.0
      %1470 = vmatpush1.msra.mxu0 0.0
      %1471 = vmatprep.subr.mxu0 0.0
      %1472 = vmatpush1.msra.mxu0 0.0
      %1473 = vmatprep.subr.mxu0 0.0
      %1474 = vmatpush1.msra.mxu0 0.0
      %1475 = vmatprep.subr.mxu0 0.0
      %1476 = vmatpush1.msra.mxu0 0.0
      %1477 = vmatprep.subr.mxu0 0.0
      %1478 = vmatpush1.msra.mxu0 0.0
      %1479 = vmatprep.subr.mxu0 0.0
      %1480 = vmatpush1.msra.mxu0 0.0
      %1481 = vmatprep.subr.mxu0 0.0
      %1482 = vmatpush1.msra.mxu0 0.0
      %1483 = vmatprep.subr.mxu0 0.0
      %1484 = vmatpush1.msra.mxu0 0.0
      %1485 = vmatprep.mubr.f32.mxu0 0.0
      %1486 = vmatmul.mubr.f32.gmra.mrb[0].mxu0 %v1419
      %v1487 = vpop.f32.mrb[0].mxu0
      %v1488 = vadd.f32 0.0, %v1487
      %v1489 = vpop.f32.mrb[0].mxu0
      %1490 = vmatprep.mubr.f32.mxu0 0.0
      %1491 = vmatmul.mubr.f32.gmra.mrb[0].mxu0 %v1420
      %v1492 = vpop.f32.mrb[0].mxu0
      %v1493 = vadd.f32 0.0, %v1492
      %v1494 = vpop.f32.mrb[0].mxu0
      %1495 = vdwg.mxu0
      %v1496 = vadd.f32 %v1488, %v1493
      %v1497 = vrot.slane %v1496, 4
      %v1498 = vadd.f32 %v1496, %v1497
      %v1499 = vrot.slane %v1498, 2
      %v1500 = vadd.f32 %v1498, %v1499
      %v1501 = vrot.slane %v1500, 1
      %v1502 = vadd.f32 %v1500, %v1501
      %v1503 = vmul.f32 %v1419, %v1419
      %v1504 = vmul.f32 %v1420, %v1420
      %1505 = vmatprep.subr.mxu0 0.0
      %1506 = vmatpush1.msra.mxu0 %v534
      %1507 = vmatprep.subr.mxu0 0.0
      %1508 = vmatpush1.msra.mxu0 %v535
      %1509 = vmatprep.subr.mxu0 0.0
      %1510 = vmatpush1.msra.mxu0 %v536
      %1511 = vmatprep.subr.mxu0 0.0
      %1512 = vmatpush1.msra.mxu0 %v537
      %1513 = vmatprep.subr.mxu0 0.0
      %1514 = vmatpush1.msra.mxu0 %v538
      %1515 = vmatprep.subr.mxu0 0.0
      %1516 = vmatpush1.msra.mxu0 %v539
      %1517 = vmatprep.subr.mxu0 0.0
      %1518 = vmatpush1.msra.mxu0 %v540
      %1519 = vmatprep.subr.mxu0 0.0
      %1520 = vmatpush1.msra.mxu0 %v541
      %1521 = vmatprep.subr.mxu0 0.0
      %1522 = vmatpush1.msra.mxu0 %v542
      %1523 = vmatprep.subr.mxu0 0.0
      %1524 = vmatpush1.msra.mxu0 %v543
      %1525 = vmatprep.subr.mxu0 0.0
      %1526 = vmatpush1.msra.mxu0 %v544
      %1527 = vmatprep.subr.mxu0 0.0
      %1528 = vmatpush1.msra.mxu0 %v545
      %1529 = vmatprep.subr.mxu0 0.0
      %1530 = vmatpush1.msra.mxu0 %v546
      %1531 = vmatprep.subr.mxu0 0.0
      %1532 = vmatpush1.msra.mxu0 %v547
      %1533 = vmatprep.subr.mxu0 0.0
      %1534 = vmatpush1.msra.mxu0 %v548
      %1535 = vmatprep.subr.mxu0 0.0
      %1536 = vmatpush1.msra.mxu0 %v549
      %1537 = vmatprep.subr.mxu0 0.0
      %1538 = vmatpush1.msra.mxu0 0.0
      %1539 = vmatprep.subr.mxu0 0.0
      %1540 = vmatpush1.msra.mxu0 0.0
      %1541 = vmatprep.subr.mxu0 0.0
      %1542 = vmatpush1.msra.mxu0 0.0
      %1543 = vmatprep.subr.mxu0 0.0
      %1544 = vmatpush1.msra.mxu0 0.0
      %1545 = vmatprep.subr.mxu0 0.0
      %1546 = vmatpush1.msra.mxu0 0.0
      %1547 = vmatprep.subr.mxu0 0.0
      %1548 = vmatpush1.msra.mxu0 0.0
      %1549 = vmatprep.subr.mxu0 0.0
      %1550 = vmatpush1.msra.mxu0 0.0
      %1551 = vmatprep.subr.mxu0 0.0
      %1552 = vmatpush1.msra.mxu0 0.0
      %1553 = vmatprep.subr.mxu0 0.0
      %1554 = vmatpush1.msra.mxu0 0.0
      %1555 = vmatprep.subr.mxu0 0.0
      %1556 = vmatpush1.msra.mxu0 0.0
      %1557 = vmatprep.subr.mxu0 0.0
      %1558 = vmatpush1.msra.mxu0 0.0
      %1559 = vmatprep.subr.mxu0 0.0
      %1560 = vmatpush1.msra.mxu0 0.0
      %1561 = vmatprep.subr.mxu0 0.0
      %1562 = vmatpush1.msra.mxu0 0.0
      %1563 = vmatprep.subr.mxu0 0.0
      %1564 = vmatpush1.msra.mxu0 0.0
      %1565 = vmatprep.subr.mxu0 0.0
      %1566 = vmatpush1.msra.mxu0 0.0
      %1567 = vmatprep.subr.mxu0 0.0
      %1568 = vmatpush1.msra.mxu0 0.0
      %1569 = vmatprep.mubr.f32.mxu0 0.0
      %1570 = vmatmul.mubr.f32.gmra.mrb[0].mxu0 %v1503
      %v1571 = vpop.f32.mrb[0].mxu0
      %v1572 = vadd.f32 0.0, %v1571
      %v1573 = vpop.f32.mrb[0].mxu0
      %1574 = vmatprep.mubr.f32.mxu0 0.0
      %1575 = vmatmul.mubr.f32.gmra.mrb[0].mxu0 %v1504
      %v1576 = vpop.f32.mrb[0].mxu0
      %v1577 = vadd.f32 0.0, %v1576
      %v1578 = vpop.f32.mrb[0].mxu0
      %1579 = vdwg.mxu0
      %v1580 = vadd.f32 %v1572, %v1577
      %v1581 = vrot.slane %v1580, 4
      %v1582 = vadd.f32 %v1580, %v1581
      %v1583 = vrot.slane %v1582, 2
      %v1584 = vadd.f32 %v1582, %v1583
      %v1585 = vrot.slane %v1584, 1
      %v1586 = vadd.f32 %v1584, %v1585
      %v1587 = vmul.f32 %v1502, 0.00390625
      %v1588 = vmul.f32 %v1586, 0.00390625
      %v1589 = vmul.f32 %v1587, %v1587
      %v1590 = vsub.f32 %v1588, %v1589
      %v1591 = vadd.f32 %v1590, 1e-05
      %v1592 = vrsqrt.pop %v1591
      %v1593 = vmul.f32 %v1088, %v1592
      %v1594 = vmul.f32 %v1587, %v1593
      %v1595 = vsub.f32 %v1089, %v1594
      %v1597 = vlaneseq
      %v1598 = vshrl.u32 %v1597, 7
      %v1599 = vsub.s32 0, %v1598
      %v1600 = vrot.slane %v1593, %v1599
      %v1602 = vmul.f32 %v1419, %v1600
      %v1603 = vmul.f32 %v1420, %v1600
      %v1605 = vlaneseq
      %v1606 = vshrl.u32 %v1605, 7
      %v1607 = vsub.s32 0, %v1606
      %v1608 = vrot.slane %v1595, %v1607
      %v1610 = vadd.f32 %v1602, %v1608
      %v1611 = vadd.f32 %v1603, %v1608
      %vm1612 = vcmp.ge.f32.partialorder %v1610, 0.0
      %vm1613 = vcmp.ge.f32.partialorder %v1611, 0.0
      %v1614 = vmul.f32 %v1610, 0.01
      %v1615 = vmul.f32 %v1611, 0.01
      %v1616 = vsel %vm1612, %v1610, %v1614
      %v1617 = vsel %vm1613, %v1611, %v1615
      %1618 = vst [vmem:[%s278] sm:$0xff] %v1616
      %1619 = vst [vmem:[%s278 + $0x8] sm:$0xff] %v1617
      %p1620 = scmp.lt.s32.totalorder %s18, 1
      %s1621 = scalar_select %p1620, %s18, 1
      %s1622 = smul.addr %s1621, 2
      %s1623 = smul.addr %s1622, 8
      %s1624 = scalar_lea.vmem %s7, %s1623
      // Predicated region
      $region49: #{stacked_conv_layers_pallas.1} parent=47 // pred_check
        %p1625 = pneg %p188
      $region50: #{stacked_conv_layers_pallas.1} parent=47 // pred_check_branch
        %1627 = sbr.rel (%p1625) target = $region52
      $region51: #{stacked_conv_layers_pallas.1} parent=47 // pred_region
        _
      $region52: #{stacked_conv_layers_pallas.1} parent=47 // pred_fallthru
        _
    $region48: #{stacked_conv_layers_pallas.1} parent=5 // pred_fallthru
      _
    %p1628 = scmp.le.s32.totalorder 2, %s13
    // Predicated region
    $region53: #{stacked_conv_layers_pallas.1} parent=5 // pred_check
      %p1629 = pneg %p1628
    $region54: #{stacked_conv_layers_pallas.1} parent=5 // pred_check_branch
      %1631 = sbr.rel (%p1629) target = $region56
    $region55: #{stacked_conv_layers_pallas.1} parent=5 // pred_region
      %s1632 = ssub.s32 %s13, 2
      // Predicated region
      $region57: #{stacked_conv_layers_pallas.1} parent=55 // pred_check
        %p1633 = pneg %p194
      $region58: #{stacked_conv_layers_pallas.1} parent=55 // pred_check_branch
        %1635 = sbr.rel (%p1633) target = $region60
      $region59: #{stacked_conv_layers_pallas.1} parent=55 // pred_region
        %p1636 = scmp.lt.s32.totalorder %s19, 1
        %s1637 = scalar_select %p1636, %s19, 1
        %s1638 = smul.addr %s1637, 2
        %s1639 = smul.addr %s1638, 8
        %s1640 = scalar_lea.vmem %s7, %s1639
      $region60: #{stacked_conv_layers_pallas.1} parent=55 // pred_fallthru
        _
    $region56: #{stacked_conv_layers_pallas.1} parent=5 // pred_fallthru
      _
  $region6: #{stacked_conv_layers_pallas.1} parent=0 // loop_footer
    %s17 = sadd.s32 1, %s13
  $region7: #{stacked_conv_layers_pallas.1} parent=0 // loop_footer_branch
    %12 = sbr.rel target = $region3
  $region8: #{stacked_conv_layers_pallas.1} parent=0 // loop_exit
    _

</llo_original>
